<compile_context>
chip_gen: v6e
topology: v6e:2x2x1
jax: 0.10.0
libtpu: 0.0.40
codegen_flags: <defaults>
</compile_context>

<pallas_src>
import functools

import jax
import jax.numpy as jnp
import numpy as np
from jax import lax
from jax.experimental import pallas as pl
from jax.experimental.pallas import tpu as pltpu


def _round_up(x, m):
    return (x + m - 1) // m * m


# ----------------------------------------------------------------------------
# Pallas kernel: grid = (batch, spatial-tile); spatial is the reduction axis.
# ----------------------------------------------------------------------------
def weight_agg_kernel(x_ref,     # (1, 1, Cin_p, tSh) cdt — haloed flat-spatial input tile
                      mask_ref,  # (1, 1, tS)  f32    — 1.0 on valid window-start lanes
                      w1_ref,    # (9, C1_p, Cin_p) cdt — per-tap fused 3x3 weights (n & d)
                      b1_ref,    # (C1_p, 1)   f32    — folded-BN bias (both branches)
                      w2_ref,    # (C2_p, C1_p) cdt   — block-diagonal fused 1x1 weights
                      b2_ref,    # (C2_p, 1)   f32
                      out_ref,   # (1, OC_p, OS_p) f32 — resident across the spatial axis
                      *, tap_shifts, t_s, oc_p):
    s_idx = pl.program_id(1)
    cdt = w1_ref.dtype

    # Output block is resident across the whole spatial ("arbitrary") axis:
    # zero on the first spatial step, accumulate every step, one writeback/batch.
    @pl.when(s_idx == 0)
    def _init():
        out_ref[...] = jnp.zeros_like(out_ref)

    # ---- fused 3x3 convs (n & d branches), in-kernel im2col -----------------
    # 9 accumulated (C1_p, Cin_p) @ (Cin_p, tS) MXU matmuls over statically
    # shifted lane slices of the haloed tile (shift = dy*Wp + dx).
    h = jnp.zeros((w1_ref.shape[1], t_s), jnp.float32)
    for t, shift in enumerate(tap_shifts):
        xs = x_ref[0, 0, :, pl.ds(shift, t_s)]           # (Cin_p, tS) static slice
        h = h + jnp.dot(w1_ref[t], xs, preferred_element_type=jnp.float32)
    h = h + b1_ref[...]                                   # folded-BN bias (lane broadcast)
    h = h * jax.nn.sigmoid(h)                             # SiLU on dense (C1_p, tS) vregs

    # ---- fused 1x1 convs (block-diagonal weight) -----------------------------
    # Kept fused: OC/OS/Cin/MID are all far below one MXU tile here.  At large
    # channel counts split into two matmuls (per perf review) to skip the zeros.
    y = jnp.dot(w2_ref[...], h.astype(cdt),
                preferred_element_type=jnp.float32) + b2_ref[...]

    # Mask zeroes the width-pad "wrap" lanes and the spatial tail padding so
    # they contribute nothing to the HW contraction below.
    n = jax.nn.sigmoid(y[:oc_p, :]) * mask_ref[0]         # (OC_p, tS)
    d = y[oc_p:, :]                                       # (OS_p, tS)

    # bmm: out += n @ d^T, contracting the lane axis of BOTH operands
    # (q @ k^T pattern — MXU-native, no XLU transpose of d).
    out_ref[0] += lax.dot_general(n.astype(cdt), d.astype(cdt),
                                  (((1,), (1,)), ((), ())),
                                  preferred_element_type=jnp.float32)


# ----------------------------------------------------------------------------
# Wrapper: halo-tiled layout prep + pallas_call
# ----------------------------------------------------------------------------
def weight_agg_forward(x_nchw, fused, *, out_channel, out_size,
                       compute_dtype=jnp.bfloat16, spatial_tile=None):
    """x_nchw: (B, Cin, H, W) float32.  Returns (B, out_channel, out_size) f32."""
    w1f, b1f, w2f, b2f, dims = fused
    cin_p, c1_p, oc_p, os_p = dims["cin_p"], dims["c1_p"], dims["oc_p"], dims["os_p"]

    B, cin, H, W = x_nchw.shape
    Hp, Wp = H + 2, W + 2

    # ---- spatial tiling (generation-aware) -----------------------------------
    # q iterates flat window-start positions over the padded grid; Q covers
    # every valid start (invalid wrap/tail lanes are masked in-kernel).
    Q = H * Wp
    if spatial_tile is None:
        # tS <= 2048 keeps the double-buffered haloed tile + f32 intermediates
        # inside v7x's 64 MiB VMEM even at Cin ~ 256; v5e/v6e (128 MiB) can use
        # up to 4096 — tune per generation.
        spatial_tile = min(2048, _round_up(Q, 128))
    t_s = spatial_tile
    n_s = pl.cdiv(Q, t_s)
    halo = 2 * Wp + 2                          # max static tap shift (dy = dx = 2)
    t_sh = _round_up(t_s + halo, 128)          # lane-aligned haloed tile width

    # ---- halo-duplicated input tiles (raw bytes + ~halo/tS overhead, NOT the
    #      9x blow-up of a materialized im2col) --------------------------------
    xp = jnp.pad(x_nchw, ((0, 0), (0, cin_p - cin), (1, 1), (1, 1)))
    x_flat = xp.reshape(B, cin_p, Hp * Wp)
    s_need = (n_s - 1) * t_s + t_sh
    x_flat = jnp.pad(x_flat, ((0, 0), (0, 0), (0, s_need - Hp * Wp)))
    gather = jnp.arange(n_s)[:, None] * t_s + jnp.arange(t_sh)[None, :]
    x_tiles = jnp.take(x_flat, gather, axis=2)              # (B, Cin_p, nS, tSh)
    x_tiles = jnp.transpose(x_tiles, (0, 2, 1, 3)).astype(compute_dtype)
    # TODO(synk): at production sizes replace this wrapper-side gather with
    # memory_space=pl.ANY + manual overlapping halo DMA to avoid the extra pass.

    # Validity mask over the flat window-start axis: position q = h*Wp + w is a
    # real output iff h < H and w < W (zeros the 2 pad columns/rows per stride).
    q = jnp.arange(n_s)[:, None] * t_s + jnp.arange(t_s)[None, :]
    mask = (((q // Wp) < H) & ((q % Wp) < W)).astype(jnp.float32)
    mask = mask.reshape(n_s, 1, t_s)

    w1 = w1f.astype(compute_dtype)
    w2 = w2f.astype(compute_dtype)

    kernel = functools.partial(
        weight_agg_kernel,
        tap_shifts=tuple(dy * Wp + dx for dy in range(3) for dx in range(3)),
        t_s=t_s, oc_p=oc_p)

    grid_spec = pltpu.PrefetchScalarGridSpec(
        num_scalar_prefetch=0,
        grid=(B, n_s),
        in_specs=[
            pl.BlockSpec((1, 1, cin_p, t_sh), lambda b, s: (b, s, 0, 0)),
            pl.BlockSpec((1, 1, t_s), lambda b, s: (s, 0, 0)),
            pl.BlockSpec(w1.shape, lambda b, s: (0, 0, 0)),   # resident weights
            pl.BlockSpec(b1f.shape, lambda b, s: (0, 0)),
            pl.BlockSpec(w2.shape, lambda b, s: (0, 0)),
            pl.BlockSpec(b2f.shape, lambda b, s: (0, 0)),
        ],
        out_specs=pl.BlockSpec((1, oc_p, os_p), lambda b, s: (b, 0, 0)),
    )

    # VMEM budget: double-buffered input tile + resident weights + f32
    # intermediates.  Clamp below v7x's 64 MiB physical VMEM and above the
    # 16/32 MiB default scoped limits so larger tiles stay double-buffered.
    itm = jnp.dtype(compute_dtype).itemsize
    est = (2 * (cin_p * t_sh * itm + 4 * t_s)
           + (9 * c1_p * cin_p + (oc_p + os_p) * c1_p) * itm
           + 4 * (c1_p + oc_p + os_p) * t_s * 4
           + 2 * oc_p * os_p * 4)
    vmem_limit = int(min(48 << 20, max(32 << 20, 2 * est)))

    out = pl.pallas_call(
        kernel,
        out_shape=jax.ShapeDtypeStruct((B, oc_p, os_p), jnp.float32),
        grid_spec=grid_spec,
        compiler_params=pltpu.CompilerParams(
            # Batch elements are independent -> shard across v7x's 2 TCs.
            # TODO(synk): if profiling shows one idle TC on v7x, switch the
            # leading axis to pltpu.CORE_PARALLEL.
            dimension_semantics=("parallel", "arbitrary"),
            vmem_limit_bytes=vmem_limit),
    )(x_tiles, mask, w1, b1f, w2, b2f)

    return out[:, :out_channel, :out_size]


# ----------------------------------------------------------------------------
# Deterministic parameters (+ eval-mode BN folding, eps = 1e-3 as in the spec)
# ----------------------------------------------------------------------------
def fold_bn(w, gamma, beta, mean, var, eps=1e-3):
    """Fold eval-mode BatchNorm2d(eps=0.001) into the preceding bias-free conv."""
    scale = gamma / jnp.sqrt(var + eps)
    return w * scale, beta - mean * scale


def make_params(key, in_size, mid_size, out_channel, out_size):
    ks = jax.random.split(key, 8)

    def bn_params(k, c):
        k1, k2, k3, k4 = jax.random.split(k, 4)
        gamma = jax.random.uniform(k1, (c,), minval=0.5, maxval=1.5)
        beta = 0.1 * jax.random.normal(k2, (c,))
        mean = 0.1 * jax.random.normal(k3, (c,))
        var = jax.random.uniform(k4, (c,), minval=0.5, maxval=1.5)
        return gamma, beta, mean, var

    # conv_n branch: 3x3 (HWIO) -> BN -> SiLU -> 1x1 (IO) -> BN -> sigmoid
    wn1 = 0.2 * jax.random.normal(ks[0], (3, 3, in_size, in_size))
    wn2 = 0.2 * jax.random.normal(ks[1], (in_size, out_channel))
    wn1, bn1 = fold_bn(wn1, *bn_params(ks[2], in_size))
    wn2, bn2 = fold_bn(wn2, *bn_params(ks[3], out_channel))

    # conv_d branch: 3x3 (HWIO) -> BN -> SiLU -> 1x1 (IO) -> BN
    wd1 = 0.2 * jax.random.normal(ks[4], (3, 3, in_size, mid_size))
    wd2 = 0.2 * jax.random.normal(ks[5], (mid_size, out_size))
    wd1, bd1 = fold_bn(wd1, *bn_params(ks[6], mid_size))
    wd2, bd2 = fold_bn(wd2, *bn_params(ks[7], out_size))

    f32 = jnp.float32
    return (wn1.astype(f32), bn1.astype(f32), wn2.astype(f32), bn2.astype(f32),
            wd1.astype(f32), bd1.astype(f32), wd2.astype(f32), bd2.astype(f32))


def fuse_params(raw, in_size, mid_size, out_channel, out_size):
    """Fused, sublane-padded kernel weights from the raw (BN-folded) weights."""
    wn1, bn1, wn2, bn2, wd1, bd1, wd2, bd2 = raw
    c1 = in_size + mid_size
    cin_p = _round_up(max(in_size, 8), 8)
    c1_p = _round_up(max(c1, 8), 8)
    oc_p = _round_up(max(out_channel, 8), 8)
    os_p = _round_up(max(out_size, 8), 8)

    # Per-tap fused 3x3 weights (9, C1_p, Cin_p), tap t = dy*3 + dx.
    wboth = jnp.concatenate([wn1, wd1], axis=-1)                 # (3,3,Cin,C1) HWIO
    wboth = jnp.transpose(wboth, (0, 1, 3, 2)).reshape(9, c1, in_size)
    w1 = jnp.zeros((9, c1_p, cin_p), jnp.float32)
    w1 = w1.at[:, :c1, :in_size].set(wboth)
    b1 = jnp.zeros((c1_p, 1), jnp.float32)
    b1 = b1.at[:c1, 0].set(jnp.concatenate([bn1, bd1]))

    # Block-diagonal fused 1x1 weights (OC_p + OS_p, C1_p).
    w2 = jnp.zeros((oc_p + os_p, c1_p), jnp.float32)
    w2 = w2.at[:out_channel, :in_size].set(wn2.T)
    w2 = w2.at[oc_p:oc_p + out_size, in_size:in_size + mid_size].set(wd2.T)
    b2 = jnp.zeros((oc_p + os_p, 1), jnp.float32)
    b2 = b2.at[:out_channel, 0].set(bn2)
    b2 = b2.at[oc_p:oc_p + out_size, 0].set(bd2)

    dims = dict(cin_p=cin_p, c1_p=c1_p, oc_p=oc_p, os_p=os_p)
    return w1, b1, w2, b2, dims


# ----------------------------------------------------------------------------
# Pure-JAX reference (unfused weights; same compute dtype as the kernel)
# ----------------------------------------------------------------------------
def ref_forward(x_nhwc, raw_params, compute_dtype=jnp.bfloat16):
    wn1, bn1, wn2, bn2, wd1, bd1, wd2, bd2 = raw_params
    B, H, W, cin = x_nhwc.shape
    cdt = compute_dtype
    xc = x_nhwc.astype(cdt)

    def conv3(x, w):
        return lax.conv_general_dilated(
            x, w.astype(cdt), (1, 1), "SAME",
            dimension_numbers=("NHWC", "HWIO", "NHWC"),
            preferred_element_type=jnp.float32)

    h = conv3(xc, wn1) + bn1
    h = h * jax.nn.sigmoid(h)
    n = jnp.einsum("bhwc,co->bhwo", h.astype(cdt), wn2.astype(cdt),
                   preferred_element_type=jnp.float32) + bn2
    n = jax.nn.sigmoid(n).reshape(B, H * W, -1)              # (B, HW, OC)

    g = conv3(xc, wd1) + bd1
    g = g * jax.nn.sigmoid(g)
    d = (jnp.einsum("bhwc,co->bhwo", g.astype(cdt), wd2.astype(cdt),
                    preferred_element_type=jnp.float32) + bd2
         ).reshape(B, H * W, -1)                             # (B, HW, OS)

    return jnp.einsum("bpc,bps->bcs", n.astype(cdt), d.astype(cdt),
                      preferred_element_type=jnp.float32)    # (B, OC, OS)


if __name__ == "__main__":
    # Module hyperparameters (small synthetic sizes).
    B, H, W = 2, 16, 16
    in_size, mid_size = 4, 8
    out_channel, out_size = 4, 8

    key = jax.random.PRNGKey(0)
    kx, kp = jax.random.split(key)

    # PyTorch input layout: NCHW (B, in_size, H, W).
    x_nchw = jax.random.normal(kx, (B, in_size, H, W), dtype=jnp.float32)

    raw_params = make_params(kp, in_size, mid_size, out_channel, out_size)
    fused = fuse_params(raw_params, in_size, mid_size, out_channel, out_size)
    ref = jax.block_until_ready(
        ref_forward(jnp.transpose(x_nchw, (0, 2, 3, 1)),
                    raw_params, compute_dtype=jnp.bfloat16))

    # Default tiling: single spatial tile at this toy size.
    out = jax.block_until_ready(
        weight_agg_forward(x_nchw, fused, out_channel=out_channel,
                           out_size=out_size))
    assert out.shape == (B, out_channel, out_size)
    np.testing.assert_allclose(np.asarray(out), np.asarray(ref),
                               rtol=2e-2, atol=2e-2)

    # Multi-tile spatial path (exercises the accumulation across the
    # "arbitrary" spatial grid axis and the validity mask / halo logic).
    out_tiled = jax.block_until_ready(
        weight_agg_forward(x_nchw, fused, out_channel=out_channel,
                           out_size=out_size, spatial_tile=128))
    np.testing.assert_allclose(np.asarray(out_tiled), np.asarray(ref),
                               rtol=2e-2, atol=2e-2)

    print("KERNEL_OK")
</pallas_src>

<mosaic_0001>
module attributes {stable_mosaic.version = 11 : i64} {
  func.func @weight_agg_kernel(%arg0: i32, %arg1: i32, %arg2: memref<1x1x8x512xbf16, #tpu.memory_space<vmem>>, %arg3: memref<1x1x384xf32, #tpu.memory_space<vmem>>, %arg4: memref<9x16x8xbf16, #tpu.memory_space<vmem>>, %arg5: memref<16x1xf32, #tpu.memory_space<vmem>>, %arg6: memref<16x16xbf16, #tpu.memory_space<vmem>>, %arg7: memref<16x1xf32, #tpu.memory_space<vmem>>, %arg8: memref<1x8x8xf32, #tpu.memory_space<vmem>>) attributes {dimension_semantics = [#tpu.dimension_semantics<parallel>, #tpu.dimension_semantics<arbitrary>], iteration_bounds = array<i64: 2, 1>, scalar_prefetch = 0 : i64, scratch_operands = 0 : i64, tpu.core_type = #tpu.core_type<tc>, window_params = [{transform_indices = @transform_0, window_bounds = array<i64: 1, 1, 8, 512>}, {transform_indices = @transform_1, window_bounds = array<i64: 1, 1, 384>}, {pipeline_mode = #tpu.pipeline_mode<synchronous>, transform_indices = @transform_2, window_bounds = array<i64: 9, 16, 8>}, {pipeline_mode = #tpu.pipeline_mode<synchronous>, transform_indices = @transform_3, window_bounds = array<i64: 16, 1>}, {pipeline_mode = #tpu.pipeline_mode<synchronous>, transform_indices = @transform_4, window_bounds = array<i64: 16, 16>}, {pipeline_mode = #tpu.pipeline_mode<synchronous>, transform_indices = @transform_5, window_bounds = array<i64: 16, 1>}, {transform_indices = @transform_6, window_bounds = array<i64: 1, 8, 8>}]} {
    %c0_i32 = arith.constant 0 : i32
    %0 = arith.cmpi eq, %arg1, %c0_i32 : i32
    %1 = arith.extui %0 : i1 to i32
    %c0_i32_0 = arith.constant 0 : i32
    %2 = arith.cmpi ne, %1, %c0_i32_0 : i32
    scf.if %2 {
      %cst_77 = arith.constant 0.000000e+00 : f32
      %93 = vector.broadcast %cst_77 : f32 to vector<1x8x8xf32>
      %c0_78 = arith.constant 0 : index
      %c0_79 = arith.constant 0 : index
      %c0_80 = arith.constant 0 : index
      %94 = vector.load %arg8[%c0_78, %c0_79, %c0_80] : memref<1x8x8xf32, #tpu.memory_space<vmem>>, vector<1x8x8xf32>
      tpu.vector_store %arg8[%c0_78, %c0_79, %c0_80], %93 {strides = array<i32>} : memref<1x8x8xf32, #tpu.memory_space<vmem>>, vector<1x8x8xf32>,
    } else {
    }
    %cst = arith.constant 0.000000e+00 : f32
    %3 = vector.broadcast %cst : f32 to vector<16x384xf32>
    %c0 = arith.constant 0 : index
    %c0_1 = arith.constant 0 : index
    %c0_2 = arith.constant 0 : index
    %c0_3 = arith.constant 0 : index
    %4 = vector.load %arg2[%c0, %c0_1, %c0_2, %c0_3] : memref<1x1x8x512xbf16, #tpu.memory_space<vmem>>, vector<1x1x8x384xbf16>
    %5 = vector.shape_cast %4 : vector<1x1x8x384xbf16> to vector<8x384xbf16>
    %c0_4 = arith.constant 0 : index
    %c0_5 = arith.constant 0 : index
    %c0_6 = arith.constant 0 : index
    %6 = vector.load %arg4[%c0_4, %c0_5, %c0_6] : memref<9x16x8xbf16, #tpu.memory_space<vmem>>, vector<1x16x8xbf16>
    %7 = vector.shape_cast %6 : vector<1x16x8xbf16> to vector<16x8xbf16>
    %cst_7 = arith.constant dense<0.000000e+00> : vector<16x384xf32>
    %8 = tpu.matmul %7, %5, %cst_7 {dimension_numbers = #tpu.dot_dimension_numbers<[1], [0], [0], [1], [0, 0, 1, 1], [], []>} : vector<16x8xbf16>, vector<8x384xbf16>, vector<16x384xf32> -> vector<16x384xf32>
    %9 = arith.addf %3, %8 : vector<16x384xf32>
    %c0_8 = arith.constant 0 : index
    %c0_9 = arith.constant 0 : index
    %c0_10 = arith.constant 0 : index
    %c1 = arith.constant 1 : index
    %10 = vector.load %arg2[%c0_8, %c0_9, %c0_10, %c1] : memref<1x1x8x512xbf16, #tpu.memory_space<vmem>>, vector<1x1x8x384xbf16>
    %11 = vector.shape_cast %10 : vector<1x1x8x384xbf16> to vector<8x384xbf16>
    %c1_11 = arith.constant 1 : index
    %c0_12 = arith.constant 0 : index
    %c0_13 = arith.constant 0 : index
    %12 = vector.load %arg4[%c1_11, %c0_12, %c0_13] : memref<9x16x8xbf16, #tpu.memory_space<vmem>>, vector<1x16x8xbf16>
    %13 = vector.shape_cast %12 : vector<1x16x8xbf16> to vector<16x8xbf16>
    %cst_14 = arith.constant dense<0.000000e+00> : vector<16x384xf32>
    %14 = tpu.matmul %13, %11, %cst_14 {dimension_numbers = #tpu.dot_dimension_numbers<[1], [0], [0], [1], [0, 0, 1, 1], [], []>} : vector<16x8xbf16>, vector<8x384xbf16>, vector<16x384xf32> -> vector<16x384xf32>
    %15 = arith.addf %9, %14 : vector<16x384xf32>
    %c0_15 = arith.constant 0 : index
    %c0_16 = arith.constant 0 : index
    %c0_17 = arith.constant 0 : index
    %c2 = arith.constant 2 : index
    %16 = vector.load %arg2[%c0_15, %c0_16, %c0_17, %c2] : memref<1x1x8x512xbf16, #tpu.memory_space<vmem>>, vector<1x1x8x384xbf16>
    %17 = vector.shape_cast %16 : vector<1x1x8x384xbf16> to vector<8x384xbf16>
    %c2_18 = arith.constant 2 : index
    %c0_19 = arith.constant 0 : index
    %c0_20 = arith.constant 0 : index
    %18 = vector.load %arg4[%c2_18, %c0_19, %c0_20] : memref<9x16x8xbf16, #tpu.memory_space<vmem>>, vector<1x16x8xbf16>
    %19 = vector.shape_cast %18 : vector<1x16x8xbf16> to vector<16x8xbf16>
    %cst_21 = arith.constant dense<0.000000e+00> : vector<16x384xf32>
    %20 = tpu.matmul %19, %17, %cst_21 {dimension_numbers = #tpu.dot_dimension_numbers<[1], [0], [0], [1], [0, 0, 1, 1], [], []>} : vector<16x8xbf16>, vector<8x384xbf16>, vector<16x384xf32> -> vector<16x384xf32>
    %21 = arith.addf %15, %20 : vector<16x384xf32>
    %c0_22 = arith.constant 0 : index
    %c0_23 = arith.constant 0 : index
    %c0_24 = arith.constant 0 : index
    %c18 = arith.constant 18 : index
    %22 = vector.load %arg2[%c0_22, %c0_23, %c0_24, %c18] : memref<1x1x8x512xbf16, #tpu.memory_space<vmem>>, vector<1x1x8x384xbf16>
    %23 = vector.shape_cast %22 : vector<1x1x8x384xbf16> to vector<8x384xbf16>
    %c3 = arith.constant 3 : index
    %c0_25 = arith.constant 0 : index
    %c0_26 = arith.constant 0 : index
    %24 = vector.load %arg4[%c3, %c0_25, %c0_26] : memref<9x16x8xbf16, #tpu.memory_space<vmem>>, vector<1x16x8xbf16>
    %25 = vector.shape_cast %24 : vector<1x16x8xbf16> to vector<16x8xbf16>
    %cst_27 = arith.constant dense<0.000000e+00> : vector<16x384xf32>
    %26 = tpu.matmul %25, %23, %cst_27 {dimension_numbers = #tpu.dot_dimension_numbers<[1], [0], [0], [1], [0, 0, 1, 1], [], []>} : vector<16x8xbf16>, vector<8x384xbf16>, vector<16x384xf32> -> vector<16x384xf32>
    %27 = arith.addf %21, %26 : vector<16x384xf32>
    %c0_28 = arith.constant 0 : index
    %c0_29 = arith.constant 0 : index
    %c0_30 = arith.constant 0 : index
    %c19 = arith.constant 19 : index
    %28 = vector.load %arg2[%c0_28, %c0_29, %c0_30, %c19] : memref<1x1x8x512xbf16, #tpu.memory_space<vmem>>, vector<1x1x8x384xbf16>
    %29 = vector.shape_cast %28 : vector<1x1x8x384xbf16> to vector<8x384xbf16>
    %c4 = arith.constant 4 : index
    %c0_31 = arith.constant 0 : index
    %c0_32 = arith.constant 0 : index
    %30 = vector.load %arg4[%c4, %c0_31, %c0_32] : memref<9x16x8xbf16, #tpu.memory_space<vmem>>, vector<1x16x8xbf16>
    %31 = vector.shape_cast %30 : vector<1x16x8xbf16> to vector<16x8xbf16>
    %cst_33 = arith.constant dense<0.000000e+00> : vector<16x384xf32>
    %32 = tpu.matmul %31, %29, %cst_33 {dimension_numbers = #tpu.dot_dimension_numbers<[1], [0], [0], [1], [0, 0, 1, 1], [], []>} : vector<16x8xbf16>, vector<8x384xbf16>, vector<16x384xf32> -> vector<16x384xf32>
    %33 = arith.addf %27, %32 : vector<16x384xf32>
    %c0_34 = arith.constant 0 : index
    %c0_35 = arith.constant 0 : index
    %c0_36 = arith.constant 0 : index
    %c20 = arith.constant 20 : index
    %34 = vector.load %arg2[%c0_34, %c0_35, %c0_36, %c20] : memref<1x1x8x512xbf16, #tpu.memory_space<vmem>>, vector<1x1x8x384xbf16>
    %35 = vector.shape_cast %34 : vector<1x1x8x384xbf16> to vector<8x384xbf16>
    %c5 = arith.constant 5 : index
    %c0_37 = arith.constant 0 : index
    %c0_38 = arith.constant 0 : index
    %36 = vector.load %arg4[%c5, %c0_37, %c0_38] : memref<9x16x8xbf16, #tpu.memory_space<vmem>>, vector<1x16x8xbf16>
    %37 = vector.shape_cast %36 : vector<1x16x8xbf16> to vector<16x8xbf16>
    %cst_39 = arith.constant dense<0.000000e+00> : vector<16x384xf32>
    %38 = tpu.matmul %37, %35, %cst_39 {dimension_numbers = #tpu.dot_dimension_numbers<[1], [0], [0], [1], [0, 0, 1, 1], [], []>} : vector<16x8xbf16>, vector<8x384xbf16>, vector<16x384xf32> -> vector<16x384xf32>
    %39 = arith.addf %33, %38 : vector<16x384xf32>
    %c0_40 = arith.constant 0 : index
    %c0_41 = arith.constant 0 : index
    %c0_42 = arith.constant 0 : index
    %c36 = arith.constant 36 : index
    %40 = vector.load %arg2[%c0_40, %c0_41, %c0_42, %c36] : memref<1x1x8x512xbf16, #tpu.memory_space<vmem>>, vector<1x1x8x384xbf16>
    %41 = vector.shape_cast %40 : vector<1x1x8x384xbf16> to vector<8x384xbf16>
    %c6 = arith.constant 6 : index
    %c0_43 = arith.constant 0 : index
    %c0_44 = arith.constant 0 : index
    %42 = vector.load %arg4[%c6, %c0_43, %c0_44] : memref<9x16x8xbf16, #tpu.memory_space<vmem>>, vector<1x16x8xbf16>
    %43 = vector.shape_cast %42 : vector<1x16x8xbf16> to vector<16x8xbf16>
    %cst_45 = arith.constant dense<0.000000e+00> : vector<16x384xf32>
    %44 = tpu.matmul %43, %41, %cst_45 {dimension_numbers = #tpu.dot_dimension_numbers<[1], [0], [0], [1], [0, 0, 1, 1], [], []>} : vector<16x8xbf16>, vector<8x384xbf16>, vector<16x384xf32> -> vector<16x384xf32>
    %45 = arith.addf %39, %44 : vector<16x384xf32>
    %c0_46 = arith.constant 0 : index
    %c0_47 = arith.constant 0 : index
    %c0_48 = arith.constant 0 : index
    %c37 = arith.constant 37 : index
    %46 = vector.load %arg2[%c0_46, %c0_47, %c0_48, %c37] : memref<1x1x8x512xbf16, #tpu.memory_space<vmem>>, vector<1x1x8x384xbf16>
    %47 = vector.shape_cast %46 : vector<1x1x8x384xbf16> to vector<8x384xbf16>
    %c7 = arith.constant 7 : index
    %c0_49 = arith.constant 0 : index
    %c0_50 = arith.constant 0 : index
    %48 = vector.load %arg4[%c7, %c0_49, %c0_50] : memref<9x16x8xbf16, #tpu.memory_space<vmem>>, vector<1x16x8xbf16>
    %49 = vector.shape_cast %48 : vector<1x16x8xbf16> to vector<16x8xbf16>
    %cst_51 = arith.constant dense<0.000000e+00> : vector<16x384xf32>
    %50 = tpu.matmul %49, %47, %cst_51 {dimension_numbers = #tpu.dot_dimension_numbers<[1], [0], [0], [1], [0, 0, 1, 1], [], []>} : vector<16x8xbf16>, vector<8x384xbf16>, vector<16x384xf32> -> vector<16x384xf32>
    %51 = arith.addf %45, %50 : vector<16x384xf32>
    %c0_52 = arith.constant 0 : index
    %c0_53 = arith.constant 0 : index
    %c0_54 = arith.constant 0 : index
    %c38 = arith.constant 38 : index
    %52 = vector.load %arg2[%c0_52, %c0_53, %c0_54, %c38] : memref<1x1x8x512xbf16, #tpu.memory_space<vmem>>, vector<1x1x8x384xbf16>
    %53 = vector.shape_cast %52 : vector<1x1x8x384xbf16> to vector<8x384xbf16>
    %c8 = arith.constant 8 : index
    %c0_55 = arith.constant 0 : index
    %c0_56 = arith.constant 0 : index
    %54 = vector.load %arg4[%c8, %c0_55, %c0_56] : memref<9x16x8xbf16, #tpu.memory_space<vmem>>, vector<1x16x8xbf16>
    %55 = vector.shape_cast %54 : vector<1x16x8xbf16> to vector<16x8xbf16>
    %cst_57 = arith.constant dense<0.000000e+00> : vector<16x384xf32>
    %56 = tpu.matmul %55, %53, %cst_57 {dimension_numbers = #tpu.dot_dimension_numbers<[1], [0], [0], [1], [0, 0, 1, 1], [], []>} : vector<16x8xbf16>, vector<8x384xbf16>, vector<16x384xf32> -> vector<16x384xf32>
    %57 = arith.addf %51, %56 : vector<16x384xf32>
    %c0_58 = arith.constant 0 : index
    %c0_59 = arith.constant 0 : index
    %58 = vector.load %arg5[%c0_58, %c0_59] : memref<16x1xf32, #tpu.memory_space<vmem>>, vector<16x1xf32>
    %59 = vector.broadcast %58 : vector<16x1xf32> to vector<16x384xf32>
    %60 = arith.addf %57, %59 : vector<16x384xf32>
    %61 = arith.negf %60 : vector<16x384xf32>
    %62 = math.exp %61 : vector<16x384xf32>
    %cst_60 = arith.constant 1.000000e+00 : f32
    %63 = vector.broadcast %cst_60 : f32 to vector<16x384xf32>
    %64 = arith.addf %63, %62 : vector<16x384xf32>
    %65 = arith.divf %63, %64 : vector<16x384xf32>
    %66 = arith.mulf %60, %65 : vector<16x384xf32>
    %c0_61 = arith.constant 0 : index
    %c0_62 = arith.constant 0 : index
    %67 = vector.load %arg6[%c0_61, %c0_62] : memref<16x16xbf16, #tpu.memory_space<vmem>>, vector<16x16xbf16>
    %68 = arith.truncf %66 : vector<16x384xf32> to vector<16x384xbf16>
    %cst_63 = arith.constant dense<0.000000e+00> : vector<16x384xf32>
    %69 = tpu.matmul %67, %68, %cst_63 {dimension_numbers = #tpu.dot_dimension_numbers<[1], [0], [0], [1], [0, 0, 1, 1], [], []>} : vector<16x16xbf16>, vector<16x384xbf16>, vector<16x384xf32> -> vector<16x384xf32>
    %c0_64 = arith.constant 0 : index
    %c0_65 = arith.constant 0 : index
    %70 = vector.load %arg7[%c0_64, %c0_65] : memref<16x1xf32, #tpu.memory_space<vmem>>, vector<16x1xf32>
    %71 = vector.broadcast %70 : vector<16x1xf32> to vector<16x384xf32>
    %72 = arith.addf %69, %71 : vector<16x384xf32>
    %73 = vector.extract_strided_slice %72 {offsets = [0, 0], sizes = [8, 384], strides = [1, 1]} : vector<16x384xf32> to vector<8x384xf32>
    %74 = arith.negf %73 : vector<8x384xf32>
    %75 = math.exp %74 : vector<8x384xf32>
    %cst_66 = arith.constant 1.000000e+00 : f32
    %76 = vector.broadcast %cst_66 : f32 to vector<8x384xf32>
    %77 = arith.addf %76, %75 : vector<8x384xf32>
    %78 = arith.divf %76, %77 : vector<8x384xf32>
    %c0_67 = arith.constant 0 : index
    %c0_68 = arith.constant 0 : index
    %c0_69 = arith.constant 0 : index
    %79 = vector.load %arg3[%c0_67, %c0_68, %c0_69] : memref<1x1x384xf32, #tpu.memory_space<vmem>>, vector<1x1x384xf32>
    %80 = vector.shape_cast %79 : vector<1x1x384xf32> to vector<1x384xf32>
    %81 = vector.broadcast %80 : vector<1x384xf32> to vector<8x384xf32>
    %82 = arith.mulf %78, %81 : vector<8x384xf32>
    %83 = vector.extract_strided_slice %72 {offsets = [8, 0], sizes = [8, 384], strides = [1, 1]} : vector<16x384xf32> to vector<8x384xf32>
    %c0_70 = arith.constant 0 : index
    %c0_71 = arith.constant 0 : index
    %c0_72 = arith.constant 0 : index
    %84 = vector.load %arg8[%c0_70, %c0_71, %c0_72] : memref<1x8x8xf32, #tpu.memory_space<vmem>>, vector<1x8x8xf32>
    %85 = vector.shape_cast %84 : vector<1x8x8xf32> to vector<8x8xf32>
    %86 = arith.truncf %82 : vector<8x384xf32> to vector<8x384xbf16>
    %87 = arith.truncf %83 : vector<8x384xf32> to vector<8x384xbf16>
    %cst_73 = arith.constant dense<0.000000e+00> : vector<8x8xf32>
    %88 = tpu.matmul %86, %87, %cst_73 {dimension_numbers = #tpu.dot_dimension_numbers<[1], [1], [0], [0], [0, 0, 1, 0], [], []>} : vector<8x384xbf16>, vector<8x384xbf16>, vector<8x8xf32> -> vector<8x8xf32>
    %89 = arith.addf %85, %88 : vector<8x8xf32>
    %c0_74 = arith.constant 0 : index
    %c0_75 = arith.constant 0 : index
    %c0_76 = arith.constant 0 : index
    %90 = vector.load %arg8[%c0_74, %c0_75, %c0_76] : memref<1x8x8xf32, #tpu.memory_space<vmem>>, vector<1x8x8xf32>
    %91 = vector.shape_cast %90 : vector<1x8x8xf32> to vector<8x8xf32>
    %92 = vector.shape_cast %89 : vector<8x8xf32> to vector<1x8x8xf32>
    tpu.vector_store %arg8[%c0_74, %c0_75, %c0_76], %92 {strides = array<i32>} : memref<1x8x8xf32, #tpu.memory_space<vmem>>, vector<1x8x8xf32>,
    return
  }
  func.func @transform_0(%arg0: i32, %arg1: i32) -> (i32, i32, i32, i32) {
    %c0_i32 = arith.constant 0 : i32
    %c0_i32_0 = arith.constant 0 : i32
    %c0_i32_1 = arith.constant 0 : i32
    return %arg0, %arg1, %c0_i32, %c0_i32_0 : i32, i32, i32, i32
  }
  func.func @transform_1(%arg0: i32, %arg1: i32) -> (i32, i32, i32) {
    %c0_i32 = arith.constant 0 : i32
    %c0_i32_0 = arith.constant 0 : i32
    %c0_i32_1 = arith.constant 0 : i32
    return %arg1, %c0_i32, %c0_i32_0 : i32, i32, i32
  }
  func.func @transform_2(%arg0: i32, %arg1: i32) -> (i32, i32, i32) {
    %c0_i32 = arith.constant 0 : i32
    %c0_i32_0 = arith.constant 0 : i32
    %c0_i32_1 = arith.constant 0 : i32
    %c0_i32_2 = arith.constant 0 : i32
    return %c0_i32, %c0_i32_0, %c0_i32_1 : i32, i32, i32
  }
  func.func @transform_3(%arg0: i32, %arg1: i32) -> (i32, i32) {
    %c0_i32 = arith.constant 0 : i32
    %c0_i32_0 = arith.constant 0 : i32
    %c0_i32_1 = arith.constant 0 : i32
    return %c0_i32, %c0_i32_0 : i32, i32
  }
  func.func @transform_4(%arg0: i32, %arg1: i32) -> (i32, i32) {
    %c0_i32 = arith.constant 0 : i32
    %c0_i32_0 = arith.constant 0 : i32
    %c0_i32_1 = arith.constant 0 : i32
    return %c0_i32, %c0_i32_0 : i32, i32
  }
  func.func @transform_5(%arg0: i32, %arg1: i32) -> (i32, i32) {
    %c0_i32 = arith.constant 0 : i32
    %c0_i32_0 = arith.constant 0 : i32
    %c0_i32_1 = arith.constant 0 : i32
    return %c0_i32, %c0_i32_0 : i32, i32
  }
  func.func @transform_6(%arg0: i32, %arg1: i32) -> (i32, i32, i32) {
    %c0_i32 = arith.constant 0 : i32
    %c0_i32_0 = arith.constant 0 : i32
    %c0_i32_1 = arith.constant 0 : i32
    return %arg0, %c0_i32, %c0_i32_0 : i32, i32, i32
  }
}

</mosaic_0001>

<llo_original>
// kernel: tpu_custom_call.1
$region0: #{tpu_custom_call.1}
  #allocation0 [shape = 'u32[]', space=smem, size = 0x4, offset = 0x4, fixed_abs, tag = 'smem constant byte address 0x4 - core index']
  #allocation1 [shape = 'u32[144,128]{1,0:T(1,128)}', space=vmem, size = 0x12000, scoped, tag = 'internal scratch']
  %s0 = inlined_call_operand.vmem [shape: bf16[2,1,8,512], index: 0, kind: input, shape index: {}]
  %s1 = inlined_call_operand.vmem [shape: f32[1,1,384], index: 1, kind: input, shape index: {}]
  %s2 = inlined_call_operand.vmem [shape: bf16[9,16,8], index: 2, kind: input, shape index: {}]
  %s3 = inlined_call_operand.vmem [shape: f32[16,1], index: 3, kind: input, shape index: {}]
  %s4 = inlined_call_operand.vmem [shape: bf16[16,16], index: 4, kind: input, shape index: {}]
  %s5 = inlined_call_operand.vmem [shape: f32[16,1], index: 5, kind: input, shape index: {}]
  %s6 = inlined_call_operand.hbm [shape: f32[2,8,8], index: 6, kind: output, shape index: {}]
  %s7 = sld [smem:[#allocation0]]
  $region61: #{tpu_custom_call.1} parent=0
    _
  %s9 = ssub.s32 1, %s7
  %s10 = scalar_select 0, %s9, %s7
  $region1: #{tpu_custom_call.1} parent=0
    #allocation2 [shape = 'u8[8192]{0}', space=vmem, size = 0x2000, scoped, tag = 'output window, operand 0']
    #allocation3 [shape = 's32[2]{0}', space=sflag, size = 0x8, scoped, tag = 'scoped memory for tpu_custom_call.1']
    %11 = vsyncpa [#allocation3], 0
    %s12 = scalar_lea.sflag [#allocation3], 1
    %13 = vsyncpa %s12, 0
    loop: start=0, step=1, limit=4
    $region2: #{tpu_custom_call.1} parent=1 // loop_pre_header
      _
    $region3: #{tpu_custom_call.1} parent=1 // loop_header
      %s15 = sphi 0, %s19
      %p16 = scmp.ge.s32.totalorder %s15, 4
      %s22 = sphi 0, %s34
      %s23 = sphi 0, %s30
      %s24 = sphi 0, %s22
      %s25 = sphi 0, %s23
      %s26 = sphi 0, %s24
      %s27 = sphi 0, %s25
      %s39 = sphi 0, %s41
      %s42 = sphi 0, %s39
      %s43 = sphi 0, %s42
      %s59 = sphi 0, %s43
      %s65 = sphi 0, %s67
      %s68 = sphi 0, %s65
      %s69 = sphi 0, %s68
      %s85 = sphi 0, %s69
      %s89 = sphi 0, %s89
      %s91 = sphi 0, %s89
      %s92 = sphi 0, %s91
      %s106 = sphi 0, %s92
      %s110 = sphi 0, %s110
      %s112 = sphi 0, %s110
      %s113 = sphi 0, %s112
      %s127 = sphi 0, %s113
      %s131 = sphi 0, %s131
      %s133 = sphi 0, %s131
      %s134 = sphi 0, %s133
      %s148 = sphi 0, %s134
      %s152 = sphi 0, %s152
      %s154 = sphi 0, %s152
      %s155 = sphi 0, %s154
      %s169 = sphi 0, %s155
      %s175 = sphi 0, %s177
      %s178 = sphi 0, %s175
      %s179 = sphi 0, %s178
      %s195 = sphi 0, %s179
    $region4: #{tpu_custom_call.1} parent=1 // loop_header_branch
      %18 = sbr.rel (%p16) target = $region8
    $region5: #{tpu_custom_call.1} parent=1 // loop_body
      %s20 = ssub.s32 %s15, 1
      %s21 = ssub.s32 %s15, 2
      %s28 = sadd.s32 1, %s23
      %p29 = scmp.ge.s32.totalorder %s28, 1
      %s30 = scalar_select %p29, 0, %s28
      %s31 = sadd.s32 1, %s22
      %s32 = scalar_select %p29, %s31, %s22
      %p33 = scmp.ge.s32.totalorder %s32, 2
      %s34 = scalar_select %p33, 0, %s32
      %s35 = ssub.s32 %s22, %s34
      %s36 = ssub.s32 %s23, %s30
      %s37 = sor.u32 %s35, %s36
      %p38 = scmp.eq.s32.totalorder %s37, 0
      %s40 = sadd.s32 %s39, 1
      %s41 = scalar_select %p38, %s39, %s40
      %p44 = pneg %p38
      %p45 = scmp.eq.s32.totalorder %s15, 1
      %p46 = por %p44, %p45
      %p47 = scmp.ne.s32.totalorder %s39, %s42
      %p48 = scmp.eq.s32.totalorder %s15, 0
      %p49 = por %p47, %p48
      %p50 = scmp.ne.s32.totalorder %s39, %s42
      %p51 = scmp.eq.s32.totalorder %s20, 1
      %p52 = por %p50, %p51
      %p53 = scmp.ne.s32.totalorder %s42, %s43
      %p54 = scmp.eq.s32.totalorder %s20, 0
      %p55 = por %p53, %p54
      %p56 = scmp.ne.s32.totalorder %s42, %s43
      %p57 = scmp.eq.s32.totalorder %s21, 1
      %p58 = por %p56, %p57
      %p60 = scmp.ne.s32.totalorder %s43, %s59
      %p61 = scmp.eq.s32.totalorder %s21, 0
      %p62 = por %p60, %p61
      %s63 = ssub.s32 %s23, %s30
      %p64 = scmp.eq.s32.totalorder %s63, 0
      %s66 = sadd.s32 %s65, 1
      %s67 = scalar_select %p64, %s65, %s66
      %p70 = pneg %p64
      %p71 = scmp.eq.s32.totalorder %s15, 1
      %p72 = por %p70, %p71
      %p73 = scmp.ne.s32.totalorder %s65, %s68
      %p74 = scmp.eq.s32.totalorder %s15, 0
      %p75 = por %p73, %p74
      %p76 = scmp.ne.s32.totalorder %s65, %s68
      %p77 = scmp.eq.s32.totalorder %s20, 1
      %p78 = por %p76, %p77
      %p79 = scmp.ne.s32.totalorder %s68, %s69
      %p80 = scmp.eq.s32.totalorder %s20, 0
      %p81 = por %p79, %p80
      %p82 = scmp.ne.s32.totalorder %s68, %s69
      %p83 = scmp.eq.s32.totalorder %s21, 1
      %p84 = por %p82, %p83
      %p86 = scmp.ne.s32.totalorder %s69, %s85
      %p87 = scmp.eq.s32.totalorder %s21, 0
      %p88 = por %p86, %p87
      %s90 = sadd.s32 %s89, 1
      %p93 = scmp.eq.s32.totalorder %s15, 1
      %p94 = scmp.ne.s32.totalorder %s89, %s91
      %p95 = scmp.eq.s32.totalorder %s15, 0
      %p96 = por %p94, %p95
      %p97 = scmp.ne.s32.totalorder %s89, %s91
      %p98 = scmp.eq.s32.totalorder %s20, 1
      %p99 = por %p97, %p98
      %p100 = scmp.ne.s32.totalorder %s91, %s92
      %p101 = scmp.eq.s32.totalorder %s20, 0
      %p102 = por %p100, %p101
      %p103 = scmp.ne.s32.totalorder %s91, %s92
      %p104 = scmp.eq.s32.totalorder %s21, 1
      %p105 = por %p103, %p104
      %p107 = scmp.ne.s32.totalorder %s92, %s106
      %p108 = scmp.eq.s32.totalorder %s21, 0
      %p109 = por %p107, %p108
      %s111 = sadd.s32 %s110, 1
      %p114 = scmp.eq.s32.totalorder %s15, 1
      %p115 = scmp.ne.s32.totalorder %s110, %s112
      %p116 = scmp.eq.s32.totalorder %s15, 0
      %p117 = por %p115, %p116
      %p118 = scmp.ne.s32.totalorder %s110, %s112
      %p119 = scmp.eq.s32.totalorder %s20, 1
      %p120 = por %p118, %p119
      %p121 = scmp.ne.s32.totalorder %s112, %s113
      %p122 = scmp.eq.s32.totalorder %s20, 0
      %p123 = por %p121, %p122
      %p124 = scmp.ne.s32.totalorder %s112, %s113
      %p125 = scmp.eq.s32.totalorder %s21, 1
      %p126 = por %p124, %p125
      %p128 = scmp.ne.s32.totalorder %s113, %s127
      %p129 = scmp.eq.s32.totalorder %s21, 0
      %p130 = por %p128, %p129
      %s132 = sadd.s32 %s131, 1
      %p135 = scmp.eq.s32.totalorder %s15, 1
      %p136 = scmp.ne.s32.totalorder %s131, %s133
      %p137 = scmp.eq.s32.totalorder %s15, 0
      %p138 = por %p136, %p137
      %p139 = scmp.ne.s32.totalorder %s131, %s133
      %p140 = scmp.eq.s32.totalorder %s20, 1
      %p141 = por %p139, %p140
      %p142 = scmp.ne.s32.totalorder %s133, %s134
      %p143 = scmp.eq.s32.totalorder %s20, 0
      %p144 = por %p142, %p143
      %p145 = scmp.ne.s32.totalorder %s133, %s134
      %p146 = scmp.eq.s32.totalorder %s21, 1
      %p147 = por %p145, %p146
      %p149 = scmp.ne.s32.totalorder %s134, %s148
      %p150 = scmp.eq.s32.totalorder %s21, 0
      %p151 = por %p149, %p150
      %s153 = sadd.s32 %s152, 1
      %p156 = scmp.eq.s32.totalorder %s15, 1
      %p157 = scmp.ne.s32.totalorder %s152, %s154
      %p158 = scmp.eq.s32.totalorder %s15, 0
      %p159 = por %p157, %p158
      %p160 = scmp.ne.s32.totalorder %s152, %s154
      %p161 = scmp.eq.s32.totalorder %s20, 1
      %p162 = por %p160, %p161
      %p163 = scmp.ne.s32.totalorder %s154, %s155
      %p164 = scmp.eq.s32.totalorder %s20, 0
      %p165 = por %p163, %p164
      %p166 = scmp.ne.s32.totalorder %s154, %s155
      %p167 = scmp.eq.s32.totalorder %s21, 1
      %p168 = por %p166, %p167
      %p170 = scmp.ne.s32.totalorder %s155, %s169
      %p171 = scmp.eq.s32.totalorder %s21, 0
      %p172 = por %p170, %p171
      %s173 = ssub.s32 %s22, %s34
      %p174 = scmp.eq.s32.totalorder %s173, 0
      %s176 = sadd.s32 %s175, 1
      %s177 = scalar_select %p174, %s175, %s176
      %p180 = pneg %p174
      %p181 = scmp.eq.s32.totalorder %s15, 1
      %p182 = por %p180, %p181
      %p183 = scmp.ne.s32.totalorder %s175, %s178
      %p184 = scmp.eq.s32.totalorder %s15, 0
      %p185 = por %p183, %p184
      %p186 = scmp.ne.s32.totalorder %s175, %s178
      %p187 = scmp.eq.s32.totalorder %s20, 1
      %p188 = por %p186, %p187
      %p189 = scmp.ne.s32.totalorder %s178, %s179
      %p190 = scmp.eq.s32.totalorder %s20, 0
      %p191 = por %p189, %p190
      %p192 = scmp.ne.s32.totalorder %s178, %s179
      %p193 = scmp.eq.s32.totalorder %s21, 1
      %p194 = por %p192, %p193
      %p196 = scmp.ne.s32.totalorder %s179, %s195
      %p197 = scmp.eq.s32.totalorder %s21, 0
      %p198 = por %p196, %p197
      %p199 = scmp.le.s32.totalorder 1, %s15
      %p200 = scmp.lt.s32.totalorder %s15, 3
      %p201 = pnand %p199, %p200
      %p202 = pneg %p201
      // Predicated region
      $region9: #{tpu_custom_call.1} parent=5 // pred_check
        _
      $region10: #{tpu_custom_call.1} parent=5 // pred_check_branch
        %204 = sbr.rel (%p201) target = $region12
      $region11: #{tpu_custom_call.1} parent=5 // pred_region
        %s205 = ssub.s32 %s15, 1
        // Predicated region
        $region13: #{tpu_custom_call.1} parent=11 // pred_check
          %p206 = pneg %p81
        $region14: #{tpu_custom_call.1} parent=11 // pred_check_branch
          %208 = sbr.rel (%p206) target = $region16
        $region15: #{tpu_custom_call.1} parent=11 // pred_region
          %p209 = scmp.lt.s32.totalorder %s25, 0
          %s210 = scalar_select %p209, %s25, 0
          %s211 = smul.addr %s210, 3
          %s212 = scalar_lea.vmem %s1, %s211
        $region16: #{tpu_custom_call.1} parent=11 // pred_fallthru
          _
        // Predicated region
        $region17: #{tpu_custom_call.1} parent=11 // pred_check
          %p213 = pneg %p102
        $region18: #{tpu_custom_call.1} parent=11 // pred_check_branch
          %215 = sbr.rel (%p213) target = $region20
        $region19: #{tpu_custom_call.1} parent=11 // pred_region
          _
        $region20: #{tpu_custom_call.1} parent=11 // pred_fallthru
          _
        // Predicated region
        $region21: #{tpu_custom_call.1} parent=11 // pred_check
          %p216 = pneg %p123
        $region22: #{tpu_custom_call.1} parent=11 // pred_check_branch
          %218 = sbr.rel (%p216) target = $region24
        $region23: #{tpu_custom_call.1} parent=11 // pred_region
          _
        $region24: #{tpu_custom_call.1} parent=11 // pred_fallthru
          _
        // Predicated region
        $region25: #{tpu_custom_call.1} parent=11 // pred_check
          %p219 = pneg %p144
        $region26: #{tpu_custom_call.1} parent=11 // pred_check_branch
          %221 = sbr.rel (%p219) target = $region28
        $region27: #{tpu_custom_call.1} parent=11 // pred_region
          _
        $region28: #{tpu_custom_call.1} parent=11 // pred_fallthru
          _
        // Predicated region
        $region29: #{tpu_custom_call.1} parent=11 // pred_check
          %p222 = pneg %p165
        $region30: #{tpu_custom_call.1} parent=11 // pred_check_branch
          %224 = sbr.rel (%p222) target = $region32
        $region31: #{tpu_custom_call.1} parent=11 // pred_region
          _
        $region32: #{tpu_custom_call.1} parent=11 // pred_fallthru
          _
      $region12: #{tpu_custom_call.1} parent=5 // pred_fallthru
        _
      %p225 = scmp.lt.s32.totalorder %s15, 2
      // Predicated region
      $region33: #{tpu_custom_call.1} parent=5 // pred_check
        %p226 = pneg %p225
      $region34: #{tpu_custom_call.1} parent=5 // pred_check_branch
        %228 = sbr.rel (%p226) target = $region36
      $region35: #{tpu_custom_call.1} parent=5 // pred_region
        // Predicated region
        $region37: #{tpu_custom_call.1} parent=35 // pred_check
          %p229 = pneg %p49
        $region38: #{tpu_custom_call.1} parent=35 // pred_check_branch
          %231 = sbr.rel (%p229) target = $region40
        $region39: #{tpu_custom_call.1} parent=35 // pred_region
          %p232 = scmp.lt.s32.totalorder %s22, 1
          %s233 = scalar_select %p232, %s22, 1
          %p234 = scmp.lt.s32.totalorder %s23, 0
          %s235 = scalar_select %p234, %s23, 0
          %s236 = smul.addr %s235, 4
          %s237 = smul.addr %s233, 4
          %s238 = sadd.s32 %s236, %s237
          %s239 = smul.addr %s238, 4
          %s240 = scalar_lea.vmem %s0, %s239
        $region40: #{tpu_custom_call.1} parent=35 // pred_fallthru
          _
      $region36: #{tpu_custom_call.1} parent=5 // pred_fallthru
        _
      %p241 = scmp.le.s32.totalorder 1, %s15
      %p242 = scmp.lt.s32.totalorder %s15, 3
      %p243 = pnand %p241, %p242
      %p244 = pneg %p243
      // Predicated region
      $region41: #{tpu_custom_call.1} parent=5 // pred_check
        _
      $region42: #{tpu_custom_call.1} parent=5 // pred_check_branch
        %246 = sbr.rel (%p243) target = $region44
      $region43: #{tpu_custom_call.1} parent=5 // pred_region
        %s247 = ssub.s32 %s15, 1
        %p248 = scmp.lt.s32.totalorder %s24, 1
        %s249 = scalar_select %p248, %s24, 1
        %p250 = scmp.lt.s32.totalorder %s25, 0
        %s251 = scalar_select %p250, %s25, 0
        %s252 = smul.addr %s251, 4
        %s253 = smul.addr %s249, 4
        %s254 = sadd.s32 %s252, %s253
        %s255 = smul.addr %s254, 4
        %s256 = scalar_lea.vmem %s0, %s255
        %p257 = pneg %p55
        %p258 = pneg %p52
        %p259 = scmp.lt.s32.totalorder %s25, 0
        %s260 = scalar_select %p259, %s25, 0
        %s261 = smul.addr %s260, 3
        %s262 = scalar_lea.vmem %s1, %s261
        %p263 = pneg %p81
        %p264 = pneg %p78
        %p265 = pneg %p102
        %p266 = pneg %p99
        %p267 = pneg %p123
        %p268 = pneg %p120
        %p269 = pneg %p144
        %p270 = pneg %p141
        %p271 = pneg %p165
        %p272 = pneg %p162
        %p273 = pneg %p191
        %p274 = pneg %p188
        %s275 = sand.u32 %s178, 1
        %s276 = scalar_lea.sflag [#allocation3], %s275
        %s277 = sand.u32 %s178, 1
        %s278 = smul.addr %s277, 8
        %s279 = scalar_lea.vmem [#allocation2], %s278
        %p280 = scmp.lt.s32.totalorder %s24, 1
        %s281 = scalar_select %p280, %s24, 1
        %p282 = scmp.lt.s32.totalorder %s25, 0
        %s283 = scalar_select %p282, %s25, 0
        %s284 = smul.addr %s283, 4
        %s285 = smul.addr %s281, 4
        %s286 = sadd.s32 %s284, %s285
        %s287 = smul.addr %s286, 4
        %s288 = scalar_lea.vmem %s0, %s287
        %p289 = scmp.lt.s32.totalorder %s25, 0
        %s290 = scalar_select %p289, %s25, 0
        %s291 = smul.addr %s290, 3
        %s292 = scalar_lea.vmem %s1, %s291
        %p294 = scmp.eq.s32.totalorder %s25, 0
        // Predicated region
        $region45: #{tpu_custom_call.1} parent=43 // pred_check
          %p295 = pneg %p294
        $region46: #{tpu_custom_call.1} parent=43 // pred_check_branch
          %297 = sbr.rel (%p295) target = $region48
        $region47: #{tpu_custom_call.1} parent=43 // pred_region
          %vm298 = vcmask 64512
          %299 = vst.msk [vmem:[%s279] sm:$0xff] %vm298, 0.0
        $region48: #{tpu_custom_call.1} parent=43 // pred_fallthru
          _
        %v300 = vld [vmem:[%s288] sm:$0xff]
        %v301 = vld [vmem:[%s288 + $0x8] sm:$0xf]
        %v302 = vld [vmem:[%s2] sm:$0xf]
        %v303 = vld [vmem:[%s2 + $0x4] sm:$0xf]
        %v304 = vld [vmem:[%s288] sm:$0xff]
        %v305 = vld [vmem:[%s288 + $0x8] sm:$0xff]
        %s306 = scalar_lea.vmem %s2, 8
        %v307 = vld [vmem:[%s306] sm:$0xf]
        %v308 = vld [vmem:[%s306 + $0x4] sm:$0xf]
        %v311 = vunpack.c.l.b16 %v307
        %v312 = vunpack.c.l.b16 %v308
        %v313 = vpack.c.b16 %v312, %v311
        %v316 = vunpack.c.l.b16 %v304
        %v317 = vunpack.c.h.b16 %v304
        %v318 = vunpack.c.l.b16 %v305
        %v319 = vunpack.c.h.b16 %v305
        %v320 = vpack.c.b16 %v316, %v316
        %v321 = vpack.c.b16 %v317, %v317
        %v322 = vpack.c.b16 %v318, %v318
        %v323 = vpack.c.b16 %v319, %v319
        %324 = vrot.lane.b32.xlu0 %v320, 127
        %v325 = vpop.permute.xlu0 %324
        %326 = vrot.lane.b32.xlu0 %v321, 127
        %v327 = vpop.permute.xlu0 %326
        %328 = vrot.lane.b32.xlu0 %v322, 127
        %v329 = vpop.permute.xlu0 %328
        %330 = vrot.lane.b32.xlu0 %v323, 127
        %v331 = vpop.permute.xlu0 %330
        %vm332 = vcmask 1039360
        %v333 = vsel %vm332, %v325, %v327
        %v334 = vsel %vm332, %v327, %v329
        %v335 = vsel %vm332, %v329, %v331
        %vm336 = vcmask 64512
        %v338 = vsel %vm336, %v313, 0
        %vm340 = vcmask 1043456
        %v342 = vsel %vm340, %v333, 0
        %v345 = vsel %vm340, %v334, 0
        %v348 = vsel %vm340, %v335, 0
        %350 = vmatprep.subr.bf16.mxu0 0
        %351 = vmatpush1.bf16.msra.mxu0 0
        %352 = vmatprep.subr.bf16.mxu0 0
        %353 = vmatpush1.bf16.msra.mxu0 0
        %354 = vmatprep.subr.bf16.mxu0 0
        %355 = vmatpush1.bf16.msra.mxu0 0
        %356 = vmatprep.subr.bf16.mxu0 0
        %357 = vmatpush1.bf16.msra.mxu0 0
        %358 = vmatprep.subr.bf16.mxu0 0
        %359 = vmatpush1.bf16.msra.mxu0 0
        %360 = vmatprep.subr.bf16.mxu0 0
        %361 = vmatpush1.bf16.msra.mxu0 0
        %362 = vmatprep.subr.bf16.mxu0 0
        %363 = vmatpush1.bf16.msra.mxu0 0
        %364 = vmatprep.subr.bf16.mxu0 %v345
        %365 = vmatpush1.bf16.msra.mxu0 %v342
        %366 = vmatprep.subr.bf16.mxu0 0
        %367 = vmatpush2.bf16.msra.mxu0 0
        %368 = vmatprep.subr.bf16.mxu0 0
        %369 = vmatpush2.bf16.msra.mxu0 0
        %370 = vmatprep.subr.bf16.mxu0 0
        %371 = vmatpush2.bf16.msra.mxu0 0
        %372 = vmatprep.subr.bf16.mxu0 0
        %373 = vmatpush2.bf16.msra.mxu0 0
        %374 = vmatprep.subr.bf16.mxu0 0
        %375 = vmatpush2.bf16.msra.mxu0 0
        %376 = vmatprep.subr.bf16.mxu0 0
        %377 = vmatpush2.bf16.msra.mxu0 0
        %378 = vmatprep.subr.bf16.mxu0 0
        %379 = vmatpush2.bf16.msra.mxu0 0
        %380 = vmatprep.subr.bf16.mxu0 0
        %381 = vmatpush2.bf16.msra.mxu0 0
        %382 = vmatprep.mubr.bf16.mxu0 0
        %383 = vmatmul.mubr.bf16.gmra.mxu0 %v338
        %v384 = vpop.f32.mrf.mxu0
        %v385 = vadd.f32 0.0, %v384
        %v386 = vpop.f32.mrf.mxu0
        %v387 = vadd.f32 0.0, %v386
        %v388 = vpop.f32.mrf.mxu0
        %v389 = vadd.f32 0.0, %v388
        %v390 = vpop.f32.mrf.mxu0
        %v391 = vadd.f32 0.0, %v390
        %392 = vdwg.mxu0
        %393 = vmatprep.subr.bf16.mxu0 0
        %394 = vmatpush1.bf16.msra.mxu0 0
        %395 = vmatprep.subr.bf16.mxu0 0
        %396 = vmatpush1.bf16.msra.mxu0 0
        %397 = vmatprep.subr.bf16.mxu0 0
        %398 = vmatpush1.bf16.msra.mxu0 0
        %399 = vmatprep.subr.bf16.mxu0 0
        %400 = vmatpush1.bf16.msra.mxu0 0
        %401 = vmatprep.subr.bf16.mxu0 0
        %402 = vmatpush1.bf16.msra.mxu0 0
        %403 = vmatprep.subr.bf16.mxu0 0
        %404 = vmatpush1.bf16.msra.mxu0 0
        %405 = vmatprep.subr.bf16.mxu0 0
        %406 = vmatpush1.bf16.msra.mxu0 0
        %407 = vmatprep.subr.bf16.mxu0 0
        %408 = vmatpush1.bf16.msra.mxu0 %v348
        %409 = vmatprep.subr.bf16.mxu0 0
        %410 = vmatpush2.bf16.msra.mxu0 0
        %411 = vmatprep.subr.bf16.mxu0 0
        %412 = vmatpush2.bf16.msra.mxu0 0
        %413 = vmatprep.subr.bf16.mxu0 0
        %414 = vmatpush2.bf16.msra.mxu0 0
        %415 = vmatprep.subr.bf16.mxu0 0
        %416 = vmatpush2.bf16.msra.mxu0 0
        %417 = vmatprep.subr.bf16.mxu0 0
        %418 = vmatpush2.bf16.msra.mxu0 0
        %419 = vmatprep.subr.bf16.mxu0 0
        %420 = vmatpush2.bf16.msra.mxu0 0
        %421 = vmatprep.subr.bf16.mxu0 0
        %422 = vmatpush2.bf16.msra.mxu0 0
        %423 = vmatprep.subr.bf16.mxu0 0
        %424 = vmatpush2.bf16.msra.mxu0 0
        %425 = vmatprep.mubr.bf16.mxu0 0
        %426 = vmatmul.mubr.bf16.gmra.mxu0 %v338
        %v427 = vpop.f32.mrf.mxu0
        %v428 = vadd.f32 0.0, %v427
        %v429 = vpop.f32.mrf.mxu0
        %v430 = vpop.f32.mrf.mxu0
        %v431 = vadd.f32 0.0, %v430
        %v432 = vpop.f32.mrf.mxu0
        %433 = vdwg.mxu0
        %v436 = vunpack.c.l.b16 %v302
        %v437 = vunpack.c.l.b16 %v303
        %v438 = vpack.c.b16 %v437, %v436
        %v441 = vunpack.c.l.b16 %v300
        %v442 = vunpack.c.h.b16 %v300
        %v443 = vunpack.c.l.b16 %v301
        %v444 = vpack.c.b16 %v441, %v441
        %v445 = vpack.c.b16 %v442, %v442
        %v446 = vpack.c.b16 %v443, %v443
        %v448 = vsel %vm336, %v438, 0
        %v451 = vsel %vm340, %v444, 0
        %v454 = vsel %vm340, %v445, 0
        %v457 = vsel %vm340, %v446, 0
        %459 = vmatprep.subr.bf16.mxu0 0
        %460 = vmatpush1.bf16.msra.mxu0 0
        %461 = vmatprep.subr.bf16.mxu0 0
        %462 = vmatpush1.bf16.msra.mxu0 0
        %463 = vmatprep.subr.bf16.mxu0 0
        %464 = vmatpush1.bf16.msra.mxu0 0
        %465 = vmatprep.subr.bf16.mxu0 0
        %466 = vmatpush1.bf16.msra.mxu0 0
        %467 = vmatprep.subr.bf16.mxu0 0
        %468 = vmatpush1.bf16.msra.mxu0 0
        %469 = vmatprep.subr.bf16.mxu0 0
        %470 = vmatpush1.bf16.msra.mxu0 0
        %471 = vmatprep.subr.bf16.mxu0 0
        %472 = vmatpush1.bf16.msra.mxu0 0
        %473 = vmatprep.subr.bf16.mxu0 %v454
        %474 = vmatpush1.bf16.msra.mxu0 %v451
        %475 = vmatprep.subr.bf16.mxu0 0
        %476 = vmatpush2.bf16.msra.mxu0 0
        %477 = vmatprep.subr.bf16.mxu0 0
        %478 = vmatpush2.bf16.msra.mxu0 0
        %479 = vmatprep.subr.bf16.mxu0 0
        %480 = vmatpush2.bf16.msra.mxu0 0
        %481 = vmatprep.subr.bf16.mxu0 0
        %482 = vmatpush2.bf16.msra.mxu0 0
        %483 = vmatprep.subr.bf16.mxu0 0
        %484 = vmatpush2.bf16.msra.mxu0 0
        %485 = vmatprep.subr.bf16.mxu0 0
        %486 = vmatpush2.bf16.msra.mxu0 0
        %487 = vmatprep.subr.bf16.mxu0 0
        %488 = vmatpush2.bf16.msra.mxu0 0
        %489 = vmatprep.subr.bf16.mxu0 0
        %490 = vmatpush2.bf16.msra.mxu0 0
        %491 = vmatprep.mubr.bf16.mxu0 0
        %492 = vmatmul.mubr.bf16.gmra.mxu0 %v448
        %v493 = vpop.f32.mrf.mxu0
        %v494 = vadd.f32 %v385, %v493
        %v495 = vpop.f32.mrf.mxu0
        %v496 = vadd.f32 %v387, %v495
        %v497 = vpop.f32.mrf.mxu0
        %v498 = vadd.f32 %v389, %v497
        %v499 = vpop.f32.mrf.mxu0
        %v500 = vadd.f32 %v391, %v499
        %501 = vdwg.mxu0
        %502 = vmatprep.subr.bf16.mxu0 0
        %503 = vmatpush1.bf16.msra.mxu0 0
        %504 = vmatprep.subr.bf16.mxu0 0
        %505 = vmatpush1.bf16.msra.mxu0 0
        %506 = vmatprep.subr.bf16.mxu0 0
        %507 = vmatpush1.bf16.msra.mxu0 0
        %508 = vmatprep.subr.bf16.mxu0 0
        %509 = vmatpush1.bf16.msra.mxu0 0
        %510 = vmatprep.subr.bf16.mxu0 0
        %511 = vmatpush1.bf16.msra.mxu0 0
        %512 = vmatprep.subr.bf16.mxu0 0
        %513 = vmatpush1.bf16.msra.mxu0 0
        %514 = vmatprep.subr.bf16.mxu0 0
        %515 = vmatpush1.bf16.msra.mxu0 0
        %516 = vmatprep.subr.bf16.mxu0 0
        %517 = vmatpush1.bf16.msra.mxu0 %v457
        %518 = vmatprep.subr.bf16.mxu0 0
        %519 = vmatpush2.bf16.msra.mxu0 0
        %520 = vmatprep.subr.bf16.mxu0 0
        %521 = vmatpush2.bf16.msra.mxu0 0
        %522 = vmatprep.subr.bf16.mxu0 0
        %523 = vmatpush2.bf16.msra.mxu0 0
        %524 = vmatprep.subr.bf16.mxu0 0
        %525 = vmatpush2.bf16.msra.mxu0 0
        %526 = vmatprep.subr.bf16.mxu0 0
        %527 = vmatpush2.bf16.msra.mxu0 0
        %528 = vmatprep.subr.bf16.mxu0 0
        %529 = vmatpush2.bf16.msra.mxu0 0
        %530 = vmatprep.subr.bf16.mxu0 0
        %531 = vmatpush2.bf16.msra.mxu0 0
        %532 = vmatprep.subr.bf16.mxu0 0
        %533 = vmatpush2.bf16.msra.mxu0 0
        %534 = vmatprep.mubr.bf16.mxu0 0
        %535 = vmatmul.mubr.bf16.gmra.mxu0 %v448
        %v536 = vpop.f32.mrf.mxu0
        %v537 = vadd.f32 %v428, %v536
        %v538 = vpop.f32.mrf.mxu0
        %v539 = vpop.f32.mrf.mxu0
        %v540 = vadd.f32 %v431, %v539
        %v541 = vpop.f32.mrf.mxu0
        %542 = vdwg.mxu0
        %s543 = scalar_lea.vmem %s2, 16
        %v544 = vld [vmem:[%s543] sm:$0xf]
        %v545 = vld [vmem:[%s543 + $0x4] sm:$0xf]
        %v548 = vunpack.c.l.b16 %v544
        %v549 = vunpack.c.l.b16 %v545
        %v550 = vpack.c.b16 %v549, %v548
        %551 = vrot.lane.b32.xlu0 %v320, 126
        %v552 = vpop.permute.xlu0 %551
        %553 = vrot.lane.b32.xlu0 %v321, 126
        %v554 = vpop.permute.xlu0 %553
        %555 = vrot.lane.b32.xlu0 %v322, 126
        %v556 = vpop.permute.xlu0 %555
        %557 = vrot.lane.b32.xlu0 %v323, 126
        %v558 = vpop.permute.xlu0 %557
        %vm559 = vcmask 1031168
        %v560 = vsel %vm559, %v552, %v554
        %v561 = vsel %vm559, %v554, %v556
        %v562 = vsel %vm559, %v556, %v558
        %v564 = vsel %vm336, %v550, 0
        %v567 = vsel %vm340, %v560, 0
        %v570 = vsel %vm340, %v561, 0
        %v573 = vsel %vm340, %v562, 0
        %575 = vmatprep.subr.bf16.mxu0 0
        %576 = vmatpush1.bf16.msra.mxu0 0
        %577 = vmatprep.subr.bf16.mxu0 0
        %578 = vmatpush1.bf16.msra.mxu0 0
        %579 = vmatprep.subr.bf16.mxu0 0
        %580 = vmatpush1.bf16.msra.mxu0 0
        %581 = vmatprep.subr.bf16.mxu0 0
        %582 = vmatpush1.bf16.msra.mxu0 0
        %583 = vmatprep.subr.bf16.mxu0 0
        %584 = vmatpush1.bf16.msra.mxu0 0
        %585 = vmatprep.subr.bf16.mxu0 0
        %586 = vmatpush1.bf16.msra.mxu0 0
        %587 = vmatprep.subr.bf16.mxu0 0
        %588 = vmatpush1.bf16.msra.mxu0 0
        %589 = vmatprep.subr.bf16.mxu0 %v570
        %590 = vmatpush1.bf16.msra.mxu0 %v567
        %591 = vmatprep.subr.bf16.mxu0 0
        %592 = vmatpush2.bf16.msra.mxu0 0
        %593 = vmatprep.subr.bf16.mxu0 0
        %594 = vmatpush2.bf16.msra.mxu0 0
        %595 = vmatprep.subr.bf16.mxu0 0
        %596 = vmatpush2.bf16.msra.mxu0 0
        %597 = vmatprep.subr.bf16.mxu0 0
        %598 = vmatpush2.bf16.msra.mxu0 0
        %599 = vmatprep.subr.bf16.mxu0 0
        %600 = vmatpush2.bf16.msra.mxu0 0
        %601 = vmatprep.subr.bf16.mxu0 0
        %602 = vmatpush2.bf16.msra.mxu0 0
        %603 = vmatprep.subr.bf16.mxu0 0
        %604 = vmatpush2.bf16.msra.mxu0 0
        %605 = vmatprep.subr.bf16.mxu0 0
        %606 = vmatpush2.bf16.msra.mxu0 0
        %607 = vmatprep.mubr.bf16.mxu0 0
        %608 = vmatmul.mubr.bf16.gmra.mxu0 %v564
        %v609 = vpop.f32.mrf.mxu0
        %v610 = vadd.f32 0.0, %v609
        %v611 = vpop.f32.mrf.mxu0
        %v612 = vadd.f32 0.0, %v611
        %v613 = vpop.f32.mrf.mxu0
        %v614 = vadd.f32 0.0, %v613
        %v615 = vpop.f32.mrf.mxu0
        %v616 = vadd.f32 0.0, %v615
        %617 = vdwg.mxu0
        %618 = vmatprep.subr.bf16.mxu0 0
        %619 = vmatpush1.bf16.msra.mxu0 0
        %620 = vmatprep.subr.bf16.mxu0 0
        %621 = vmatpush1.bf16.msra.mxu0 0
        %622 = vmatprep.subr.bf16.mxu0 0
        %623 = vmatpush1.bf16.msra.mxu0 0
        %624 = vmatprep.subr.bf16.mxu0 0
        %625 = vmatpush1.bf16.msra.mxu0 0
        %626 = vmatprep.subr.bf16.mxu0 0
        %627 = vmatpush1.bf16.msra.mxu0 0
        %628 = vmatprep.subr.bf16.mxu0 0
        %629 = vmatpush1.bf16.msra.mxu0 0
        %630 = vmatprep.subr.bf16.mxu0 0
        %631 = vmatpush1.bf16.msra.mxu0 0
        %632 = vmatprep.subr.bf16.mxu0 0
        %633 = vmatpush1.bf16.msra.mxu0 %v573
        %634 = vmatprep.subr.bf16.mxu0 0
        %635 = vmatpush2.bf16.msra.mxu0 0
        %636 = vmatprep.subr.bf16.mxu0 0
        %637 = vmatpush2.bf16.msra.mxu0 0
        %638 = vmatprep.subr.bf16.mxu0 0
        %639 = vmatpush2.bf16.msra.mxu0 0
        %640 = vmatprep.subr.bf16.mxu0 0
        %641 = vmatpush2.bf16.msra.mxu0 0
        %642 = vmatprep.subr.bf16.mxu0 0
        %643 = vmatpush2.bf16.msra.mxu0 0
        %644 = vmatprep.subr.bf16.mxu0 0
        %645 = vmatpush2.bf16.msra.mxu0 0
        %646 = vmatprep.subr.bf16.mxu0 0
        %647 = vmatpush2.bf16.msra.mxu0 0
        %648 = vmatprep.subr.bf16.mxu0 0
        %649 = vmatpush2.bf16.msra.mxu0 0
        %650 = vmatprep.mubr.bf16.mxu0 0
        %651 = vmatmul.mubr.bf16.gmra.mxu0 %v564
        %v652 = vpop.f32.mrf.mxu0
        %v653 = vadd.f32 0.0, %v652
        %v654 = vpop.f32.mrf.mxu0
        %v655 = vpop.f32.mrf.mxu0
        %v656 = vadd.f32 0.0, %v655
        %v657 = vpop.f32.mrf.mxu0
        %658 = vdwg.mxu0
        %v659 = vadd.f32 %v494, %v610
        %v660 = vadd.f32 %v496, %v612
        %v661 = vadd.f32 %v537, %v653
        %v662 = vadd.f32 %v498, %v614
        %v663 = vadd.f32 %v500, %v616
        %v664 = vadd.f32 %v540, %v656
        %s665 = scalar_lea.vmem %s2, 24
        %v666 = vld [vmem:[%s665] sm:$0xf]
        %v667 = vld [vmem:[%s665 + $0x4] sm:$0xf]
        %v670 = vunpack.c.l.b16 %v666
        %v671 = vunpack.c.l.b16 %v667
        %v672 = vpack.c.b16 %v671, %v670
        %673 = vrot.lane.b32.xlu0 %v320, 110
        %v674 = vpop.permute.xlu0 %673
        %675 = vrot.lane.b32.xlu0 %v321, 110
        %v676 = vpop.permute.xlu0 %675
        %677 = vrot.lane.b32.xlu0 %v322, 110
        %v678 = vpop.permute.xlu0 %677
        %679 = vrot.lane.b32.xlu0 %v323, 110
        %v680 = vpop.permute.xlu0 %679
        %vm681 = vcmask 900096
        %v682 = vsel %vm681, %v674, %v676
        %v683 = vsel %vm681, %v676, %v678
        %v684 = vsel %vm681, %v678, %v680
        %v686 = vsel %vm336, %v672, 0
        %v689 = vsel %vm340, %v682, 0
        %v692 = vsel %vm340, %v683, 0
        %v695 = vsel %vm340, %v684, 0
        %697 = vmatprep.subr.bf16.mxu0 0
        %698 = vmatpush1.bf16.msra.mxu0 0
        %699 = vmatprep.subr.bf16.mxu0 0
        %700 = vmatpush1.bf16.msra.mxu0 0
        %701 = vmatprep.subr.bf16.mxu0 0
        %702 = vmatpush1.bf16.msra.mxu0 0
        %703 = vmatprep.subr.bf16.mxu0 0
        %704 = vmatpush1.bf16.msra.mxu0 0
        %705 = vmatprep.subr.bf16.mxu0 0
        %706 = vmatpush1.bf16.msra.mxu0 0
        %707 = vmatprep.subr.bf16.mxu0 0
        %708 = vmatpush1.bf16.msra.mxu0 0
        %709 = vmatprep.subr.bf16.mxu0 0
        %710 = vmatpush1.bf16.msra.mxu0 0
        %711 = vmatprep.subr.bf16.mxu0 %v692
        %712 = vmatpush1.bf16.msra.mxu0 %v689
        %713 = vmatprep.subr.bf16.mxu0 0
        %714 = vmatpush2.bf16.msra.mxu0 0
        %715 = vmatprep.subr.bf16.mxu0 0
        %716 = vmatpush2.bf16.msra.mxu0 0
        %717 = vmatprep.subr.bf16.mxu0 0
        %718 = vmatpush2.bf16.msra.mxu0 0
        %719 = vmatprep.subr.bf16.mxu0 0
        %720 = vmatpush2.bf16.msra.mxu0 0
        %721 = vmatprep.subr.bf16.mxu0 0
        %722 = vmatpush2.bf16.msra.mxu0 0
        %723 = vmatprep.subr.bf16.mxu0 0
        %724 = vmatpush2.bf16.msra.mxu0 0
        %725 = vmatprep.subr.bf16.mxu0 0
        %726 = vmatpush2.bf16.msra.mxu0 0
        %727 = vmatprep.subr.bf16.mxu0 0
        %728 = vmatpush2.bf16.msra.mxu0 0
        %729 = vmatprep.mubr.bf16.mxu0 0
        %730 = vmatmul.mubr.bf16.gmra.mxu0 %v686
        %v731 = vpop.f32.mrf.mxu0
        %v732 = vadd.f32 0.0, %v731
        %v733 = vpop.f32.mrf.mxu0
        %v734 = vadd.f32 0.0, %v733
        %v735 = vpop.f32.mrf.mxu0
        %v736 = vadd.f32 0.0, %v735
        %v737 = vpop.f32.mrf.mxu0
        %v738 = vadd.f32 0.0, %v737
        %739 = vdwg.mxu0
        %740 = vmatprep.subr.bf16.mxu0 0
        %741 = vmatpush1.bf16.msra.mxu0 0
        %742 = vmatprep.subr.bf16.mxu0 0
        %743 = vmatpush1.bf16.msra.mxu0 0
        %744 = vmatprep.subr.bf16.mxu0 0
        %745 = vmatpush1.bf16.msra.mxu0 0
        %746 = vmatprep.subr.bf16.mxu0 0
        %747 = vmatpush1.bf16.msra.mxu0 0
        %748 = vmatprep.subr.bf16.mxu0 0
        %749 = vmatpush1.bf16.msra.mxu0 0
        %750 = vmatprep.subr.bf16.mxu0 0
        %751 = vmatpush1.bf16.msra.mxu0 0
        %752 = vmatprep.subr.bf16.mxu0 0
        %753 = vmatpush1.bf16.msra.mxu0 0
        %754 = vmatprep.subr.bf16.mxu0 0
        %755 = vmatpush1.bf16.msra.mxu0 %v695
        %756 = vmatprep.subr.bf16.mxu0 0
        %757 = vmatpush2.bf16.msra.mxu0 0
        %758 = vmatprep.subr.bf16.mxu0 0
        %759 = vmatpush2.bf16.msra.mxu0 0
        %760 = vmatprep.subr.bf16.mxu0 0
        %761 = vmatpush2.bf16.msra.mxu0 0
        %762 = vmatprep.subr.bf16.mxu0 0
        %763 = vmatpush2.bf16.msra.mxu0 0
        %764 = vmatprep.subr.bf16.mxu0 0
        %765 = vmatpush2.bf16.msra.mxu0 0
        %766 = vmatprep.subr.bf16.mxu0 0
        %767 = vmatpush2.bf16.msra.mxu0 0
        %768 = vmatprep.subr.bf16.mxu0 0
        %769 = vmatpush2.bf16.msra.mxu0 0
        %770 = vmatprep.subr.bf16.mxu0 0
        %771 = vmatpush2.bf16.msra.mxu0 0
        %772 = vmatprep.mubr.bf16.mxu0 0
        %773 = vmatmul.mubr.bf16.gmra.mxu0 %v686
        %v774 = vpop.f32.mrf.mxu0
        %v775 = vadd.f32 0.0, %v774
        %v776 = vpop.f32.mrf.mxu0
        %v777 = vpop.f32.mrf.mxu0
        %v778 = vadd.f32 0.0, %v777
        %v779 = vpop.f32.mrf.mxu0
        %780 = vdwg.mxu0
        %v781 = vadd.f32 %v659, %v732
        %v782 = vadd.f32 %v660, %v734
        %v783 = vadd.f32 %v661, %v775
        %v784 = vadd.f32 %v662, %v736
        %v785 = vadd.f32 %v663, %v738
        %v786 = vadd.f32 %v664, %v778
        %s787 = scalar_lea.vmem %s2, 32
        %v788 = vld [vmem:[%s787] sm:$0xf]
        %v789 = vld [vmem:[%s787 + $0x4] sm:$0xf]
        %v792 = vunpack.c.l.b16 %v788
        %v793 = vunpack.c.l.b16 %v789
        %v794 = vpack.c.b16 %v793, %v792
        %795 = vrot.lane.b32.xlu0 %v320, 109
        %v796 = vpop.permute.xlu0 %795
        %797 = vrot.lane.b32.xlu0 %v321, 109
        %v798 = vpop.permute.xlu0 %797
        %799 = vrot.lane.b32.xlu0 %v322, 109
        %v800 = vpop.permute.xlu0 %799
        %801 = vrot.lane.b32.xlu0 %v323, 109
        %v802 = vpop.permute.xlu0 %801
        %vm803 = vcmask 891904
        %v804 = vsel %vm803, %v796, %v798
        %v805 = vsel %vm803, %v798, %v800
        %v806 = vsel %vm803, %v800, %v802
        %v808 = vsel %vm336, %v794, 0
        %v811 = vsel %vm340, %v804, 0
        %v814 = vsel %vm340, %v805, 0
        %v817 = vsel %vm340, %v806, 0
        %819 = vmatprep.subr.bf16.mxu0 0
        %820 = vmatpush1.bf16.msra.mxu0 0
        %821 = vmatprep.subr.bf16.mxu0 0
        %822 = vmatpush1.bf16.msra.mxu0 0
        %823 = vmatprep.subr.bf16.mxu0 0
        %824 = vmatpush1.bf16.msra.mxu0 0
        %825 = vmatprep.subr.bf16.mxu0 0
        %826 = vmatpush1.bf16.msra.mxu0 0
        %827 = vmatprep.subr.bf16.mxu0 0
        %828 = vmatpush1.bf16.msra.mxu0 0
        %829 = vmatprep.subr.bf16.mxu0 0
        %830 = vmatpush1.bf16.msra.mxu0 0
        %831 = vmatprep.subr.bf16.mxu0 0
        %832 = vmatpush1.bf16.msra.mxu0 0
        %833 = vmatprep.subr.bf16.mxu0 %v814
        %834 = vmatpush1.bf16.msra.mxu0 %v811
        %835 = vmatprep.subr.bf16.mxu0 0
        %836 = vmatpush2.bf16.msra.mxu0 0
        %837 = vmatprep.subr.bf16.mxu0 0
        %838 = vmatpush2.bf16.msra.mxu0 0
        %839 = vmatprep.subr.bf16.mxu0 0
        %840 = vmatpush2.bf16.msra.mxu0 0
        %841 = vmatprep.subr.bf16.mxu0 0
        %842 = vmatpush2.bf16.msra.mxu0 0
        %843 = vmatprep.subr.bf16.mxu0 0
        %844 = vmatpush2.bf16.msra.mxu0 0
        %845 = vmatprep.subr.bf16.mxu0 0
        %846 = vmatpush2.bf16.msra.mxu0 0
        %847 = vmatprep.subr.bf16.mxu0 0
        %848 = vmatpush2.bf16.msra.mxu0 0
        %849 = vmatprep.subr.bf16.mxu0 0
        %850 = vmatpush2.bf16.msra.mxu0 0
        %851 = vmatprep.mubr.bf16.mxu0 0
        %852 = vmatmul.mubr.bf16.gmra.mxu0 %v808
        %v853 = vpop.f32.mrf.mxu0
        %v854 = vadd.f32 0.0, %v853
        %v855 = vpop.f32.mrf.mxu0
        %v856 = vadd.f32 0.0, %v855
        %v857 = vpop.f32.mrf.mxu0
        %v858 = vadd.f32 0.0, %v857
        %v859 = vpop.f32.mrf.mxu0
        %v860 = vadd.f32 0.0, %v859
        %861 = vdwg.mxu0
        %862 = vmatprep.subr.bf16.mxu0 0
        %863 = vmatpush1.bf16.msra.mxu0 0
        %864 = vmatprep.subr.bf16.mxu0 0
        %865 = vmatpush1.bf16.msra.mxu0 0
        %866 = vmatprep.subr.bf16.mxu0 0
        %867 = vmatpush1.bf16.msra.mxu0 0
        %868 = vmatprep.subr.bf16.mxu0 0
        %869 = vmatpush1.bf16.msra.mxu0 0
        %870 = vmatprep.subr.bf16.mxu0 0
        %871 = vmatpush1.bf16.msra.mxu0 0
        %872 = vmatprep.subr.bf16.mxu0 0
        %873 = vmatpush1.bf16.msra.mxu0 0
        %874 = vmatprep.subr.bf16.mxu0 0
        %875 = vmatpush1.bf16.msra.mxu0 0
        %876 = vmatprep.subr.bf16.mxu0 0
        %877 = vmatpush1.bf16.msra.mxu0 %v817
        %878 = vmatprep.subr.bf16.mxu0 0
        %879 = vmatpush2.bf16.msra.mxu0 0
        %880 = vmatprep.subr.bf16.mxu0 0
        %881 = vmatpush2.bf16.msra.mxu0 0
        %882 = vmatprep.subr.bf16.mxu0 0
        %883 = vmatpush2.bf16.msra.mxu0 0
        %884 = vmatprep.subr.bf16.mxu0 0
        %885 = vmatpush2.bf16.msra.mxu0 0
        %886 = vmatprep.subr.bf16.mxu0 0
        %887 = vmatpush2.bf16.msra.mxu0 0
        %888 = vmatprep.subr.bf16.mxu0 0
        %889 = vmatpush2.bf16.msra.mxu0 0
        %890 = vmatprep.subr.bf16.mxu0 0
        %891 = vmatpush2.bf16.msra.mxu0 0
        %892 = vmatprep.subr.bf16.mxu0 0
        %893 = vmatpush2.bf16.msra.mxu0 0
        %894 = vmatprep.mubr.bf16.mxu0 0
        %895 = vmatmul.mubr.bf16.gmra.mxu0 %v808
        %v896 = vpop.f32.mrf.mxu0
        %v897 = vadd.f32 0.0, %v896
        %v898 = vpop.f32.mrf.mxu0
        %v899 = vpop.f32.mrf.mxu0
        %v900 = vadd.f32 0.0, %v899
        %v901 = vpop.f32.mrf.mxu0
        %902 = vdwg.mxu0
        %v903 = vadd.f32 %v781, %v854
        %v904 = vadd.f32 %v782, %v856
        %v905 = vadd.f32 %v783, %v897
        %v906 = vadd.f32 %v784, %v858
        %v907 = vadd.f32 %v785, %v860
        %v908 = vadd.f32 %v786, %v900
        %s909 = scalar_lea.vmem %s2, 40
        %v910 = vld [vmem:[%s909] sm:$0xf]
        %v911 = vld [vmem:[%s909 + $0x4] sm:$0xf]
        %v914 = vunpack.c.l.b16 %v910
        %v915 = vunpack.c.l.b16 %v911
        %v916 = vpack.c.b16 %v915, %v914
        %917 = vrot.lane.b32.xlu0 %v320, 108
        %v918 = vpop.permute.xlu0 %917
        %919 = vrot.lane.b32.xlu0 %v321, 108
        %v920 = vpop.permute.xlu0 %919
        %921 = vrot.lane.b32.xlu0 %v322, 108
        %v922 = vpop.permute.xlu0 %921
        %923 = vrot.lane.b32.xlu0 %v323, 108
        %v924 = vpop.permute.xlu0 %923
        %vm925 = vcmask 883712
        %v926 = vsel %vm925, %v918, %v920
        %v927 = vsel %vm925, %v920, %v922
        %v928 = vsel %vm925, %v922, %v924
        %v930 = vsel %vm336, %v916, 0
        %v933 = vsel %vm340, %v926, 0
        %v936 = vsel %vm340, %v927, 0
        %v939 = vsel %vm340, %v928, 0
        %941 = vmatprep.subr.bf16.mxu0 0
        %942 = vmatpush1.bf16.msra.mxu0 0
        %943 = vmatprep.subr.bf16.mxu0 0
        %944 = vmatpush1.bf16.msra.mxu0 0
        %945 = vmatprep.subr.bf16.mxu0 0
        %946 = vmatpush1.bf16.msra.mxu0 0
        %947 = vmatprep.subr.bf16.mxu0 0
        %948 = vmatpush1.bf16.msra.mxu0 0
        %949 = vmatprep.subr.bf16.mxu0 0
        %950 = vmatpush1.bf16.msra.mxu0 0
        %951 = vmatprep.subr.bf16.mxu0 0
        %952 = vmatpush1.bf16.msra.mxu0 0
        %953 = vmatprep.subr.bf16.mxu0 0
        %954 = vmatpush1.bf16.msra.mxu0 0
        %955 = vmatprep.subr.bf16.mxu0 %v936
        %956 = vmatpush1.bf16.msra.mxu0 %v933
        %957 = vmatprep.subr.bf16.mxu0 0
        %958 = vmatpush2.bf16.msra.mxu0 0
        %959 = vmatprep.subr.bf16.mxu0 0
        %960 = vmatpush2.bf16.msra.mxu0 0
        %961 = vmatprep.subr.bf16.mxu0 0
        %962 = vmatpush2.bf16.msra.mxu0 0
        %963 = vmatprep.subr.bf16.mxu0 0
        %964 = vmatpush2.bf16.msra.mxu0 0
        %965 = vmatprep.subr.bf16.mxu0 0
        %966 = vmatpush2.bf16.msra.mxu0 0
        %967 = vmatprep.subr.bf16.mxu0 0
        %968 = vmatpush2.bf16.msra.mxu0 0
        %969 = vmatprep.subr.bf16.mxu0 0
        %970 = vmatpush2.bf16.msra.mxu0 0
        %971 = vmatprep.subr.bf16.mxu0 0
        %972 = vmatpush2.bf16.msra.mxu0 0
        %973 = vmatprep.mubr.bf16.mxu0 0
        %974 = vmatmul.mubr.bf16.gmra.mxu0 %v930
        %v975 = vpop.f32.mrf.mxu0
        %v976 = vadd.f32 0.0, %v975
        %v977 = vpop.f32.mrf.mxu0
        %v978 = vadd.f32 0.0, %v977
        %v979 = vpop.f32.mrf.mxu0
        %v980 = vadd.f32 0.0, %v979
        %v981 = vpop.f32.mrf.mxu0
        %v982 = vadd.f32 0.0, %v981
        %983 = vdwg.mxu0
        %984 = vmatprep.subr.bf16.mxu0 0
        %985 = vmatpush1.bf16.msra.mxu0 0
        %986 = vmatprep.subr.bf16.mxu0 0
        %987 = vmatpush1.bf16.msra.mxu0 0
        %988 = vmatprep.subr.bf16.mxu0 0
        %989 = vmatpush1.bf16.msra.mxu0 0
        %990 = vmatprep.subr.bf16.mxu0 0
        %991 = vmatpush1.bf16.msra.mxu0 0
        %992 = vmatprep.subr.bf16.mxu0 0
        %993 = vmatpush1.bf16.msra.mxu0 0
        %994 = vmatprep.subr.bf16.mxu0 0
        %995 = vmatpush1.bf16.msra.mxu0 0
        %996 = vmatprep.subr.bf16.mxu0 0
        %997 = vmatpush1.bf16.msra.mxu0 0
        %998 = vmatprep.subr.bf16.mxu0 0
        %999 = vmatpush1.bf16.msra.mxu0 %v939
        %1000 = vmatprep.subr.bf16.mxu0 0
        %1001 = vmatpush2.bf16.msra.mxu0 0
        %1002 = vmatprep.subr.bf16.mxu0 0
        %1003 = vmatpush2.bf16.msra.mxu0 0
        %1004 = vmatprep.subr.bf16.mxu0 0
        %1005 = vmatpush2.bf16.msra.mxu0 0
        %1006 = vmatprep.subr.bf16.mxu0 0
        %1007 = vmatpush2.bf16.msra.mxu0 0
        %1008 = vmatprep.subr.bf16.mxu0 0
        %1009 = vmatpush2.bf16.msra.mxu0 0
        %1010 = vmatprep.subr.bf16.mxu0 0
        %1011 = vmatpush2.bf16.msra.mxu0 0
        %1012 = vmatprep.subr.bf16.mxu0 0
        %1013 = vmatpush2.bf16.msra.mxu0 0
        %1014 = vmatprep.subr.bf16.mxu0 0
        %1015 = vmatpush2.bf16.msra.mxu0 0
        %1016 = vmatprep.mubr.bf16.mxu0 0
        %1017 = vmatmul.mubr.bf16.gmra.mxu0 %v930
        %v1018 = vpop.f32.mrf.mxu0
        %v1019 = vadd.f32 0.0, %v1018
        %v1020 = vpop.f32.mrf.mxu0
        %v1021 = vpop.f32.mrf.mxu0
        %v1022 = vadd.f32 0.0, %v1021
        %v1023 = vpop.f32.mrf.mxu0
        %1024 = vdwg.mxu0
        %v1025 = vadd.f32 %v903, %v976
        %v1026 = vadd.f32 %v904, %v978
        %v1027 = vadd.f32 %v905, %v1019
        %v1028 = vadd.f32 %v906, %v980
        %v1029 = vadd.f32 %v907, %v982
        %v1030 = vadd.f32 %v908, %v1022
        %s1031 = scalar_lea.vmem %s2, 48
        %v1032 = vld [vmem:[%s1031] sm:$0xf]
        %v1033 = vld [vmem:[%s1031 + $0x4] sm:$0xf]
        %v1036 = vunpack.c.l.b16 %v1032
        %v1037 = vunpack.c.l.b16 %v1033
        %v1038 = vpack.c.b16 %v1037, %v1036
        %1039 = vrot.lane.b32.xlu0 %v320, 92
        %v1040 = vpop.permute.xlu0 %1039
        %1041 = vrot.lane.b32.xlu0 %v321, 92
        %v1042 = vpop.permute.xlu0 %1041
        %1043 = vrot.lane.b32.xlu0 %v322, 92
        %v1044 = vpop.permute.xlu0 %1043
        %1045 = vrot.lane.b32.xlu0 %v323, 92
        %v1046 = vpop.permute.xlu0 %1045
        %vm1047 = vcmask 752640
        %v1048 = vsel %vm1047, %v1040, %v1042
        %v1049 = vsel %vm1047, %v1042, %v1044
        %v1050 = vsel %vm1047, %v1044, %v1046
        %v1052 = vsel %vm336, %v1038, 0
        %v1055 = vsel %vm340, %v1048, 0
        %v1058 = vsel %vm340, %v1049, 0
        %v1061 = vsel %vm340, %v1050, 0
        %1063 = vmatprep.subr.bf16.mxu0 0
        %1064 = vmatpush1.bf16.msra.mxu0 0
        %1065 = vmatprep.subr.bf16.mxu0 0
        %1066 = vmatpush1.bf16.msra.mxu0 0
        %1067 = vmatprep.subr.bf16.mxu0 0
        %1068 = vmatpush1.bf16.msra.mxu0 0
        %1069 = vmatprep.subr.bf16.mxu0 0
        %1070 = vmatpush1.bf16.msra.mxu0 0
        %1071 = vmatprep.subr.bf16.mxu0 0
        %1072 = vmatpush1.bf16.msra.mxu0 0
        %1073 = vmatprep.subr.bf16.mxu0 0
        %1074 = vmatpush1.bf16.msra.mxu0 0
        %1075 = vmatprep.subr.bf16.mxu0 0
        %1076 = vmatpush1.bf16.msra.mxu0 0
        %1077 = vmatprep.subr.bf16.mxu0 %v1058
        %1078 = vmatpush1.bf16.msra.mxu0 %v1055
        %1079 = vmatprep.subr.bf16.mxu0 0
        %1080 = vmatpush2.bf16.msra.mxu0 0
        %1081 = vmatprep.subr.bf16.mxu0 0
        %1082 = vmatpush2.bf16.msra.mxu0 0
        %1083 = vmatprep.subr.bf16.mxu0 0
        %1084 = vmatpush2.bf16.msra.mxu0 0
        %1085 = vmatprep.subr.bf16.mxu0 0
        %1086 = vmatpush2.bf16.msra.mxu0 0
        %1087 = vmatprep.subr.bf16.mxu0 0
        %1088 = vmatpush2.bf16.msra.mxu0 0
        %1089 = vmatprep.subr.bf16.mxu0 0
        %1090 = vmatpush2.bf16.msra.mxu0 0
        %1091 = vmatprep.subr.bf16.mxu0 0
        %1092 = vmatpush2.bf16.msra.mxu0 0
        %1093 = vmatprep.subr.bf16.mxu0 0
        %1094 = vmatpush2.bf16.msra.mxu0 0
        %1095 = vmatprep.mubr.bf16.mxu0 0
        %1096 = vmatmul.mubr.bf16.gmra.mxu0 %v1052
        %v1097 = vpop.f32.mrf.mxu0
        %v1098 = vadd.f32 0.0, %v1097
        %v1099 = vpop.f32.mrf.mxu0
        %v1100 = vadd.f32 0.0, %v1099
        %v1101 = vpop.f32.mrf.mxu0
        %v1102 = vadd.f32 0.0, %v1101
        %v1103 = vpop.f32.mrf.mxu0
        %v1104 = vadd.f32 0.0, %v1103
        %1105 = vdwg.mxu0
        %1106 = vmatprep.subr.bf16.mxu0 0
        %1107 = vmatpush1.bf16.msra.mxu0 0
        %1108 = vmatprep.subr.bf16.mxu0 0
        %1109 = vmatpush1.bf16.msra.mxu0 0
        %1110 = vmatprep.subr.bf16.mxu0 0
        %1111 = vmatpush1.bf16.msra.mxu0 0
        %1112 = vmatprep.subr.bf16.mxu0 0
        %1113 = vmatpush1.bf16.msra.mxu0 0
        %1114 = vmatprep.subr.bf16.mxu0 0
        %1115 = vmatpush1.bf16.msra.mxu0 0
        %1116 = vmatprep.subr.bf16.mxu0 0
        %1117 = vmatpush1.bf16.msra.mxu0 0
        %1118 = vmatprep.subr.bf16.mxu0 0
        %1119 = vmatpush1.bf16.msra.mxu0 0
        %1120 = vmatprep.subr.bf16.mxu0 0
        %1121 = vmatpush1.bf16.msra.mxu0 %v1061
        %1122 = vmatprep.subr.bf16.mxu0 0
        %1123 = vmatpush2.bf16.msra.mxu0 0
        %1124 = vmatprep.subr.bf16.mxu0 0
        %1125 = vmatpush2.bf16.msra.mxu0 0
        %1126 = vmatprep.subr.bf16.mxu0 0
        %1127 = vmatpush2.bf16.msra.mxu0 0
        %1128 = vmatprep.subr.bf16.mxu0 0
        %1129 = vmatpush2.bf16.msra.mxu0 0
        %1130 = vmatprep.subr.bf16.mxu0 0
        %1131 = vmatpush2.bf16.msra.mxu0 0
        %1132 = vmatprep.subr.bf16.mxu0 0
        %1133 = vmatpush2.bf16.msra.mxu0 0
        %1134 = vmatprep.subr.bf16.mxu0 0
        %1135 = vmatpush2.bf16.msra.mxu0 0
        %1136 = vmatprep.subr.bf16.mxu0 0
        %1137 = vmatpush2.bf16.msra.mxu0 0
        %1138 = vmatprep.mubr.bf16.mxu0 0
        %1139 = vmatmul.mubr.bf16.gmra.mxu0 %v1052
        %v1140 = vpop.f32.mrf.mxu0
        %v1141 = vadd.f32 0.0, %v1140
        %v1142 = vpop.f32.mrf.mxu0
        %v1143 = vpop.f32.mrf.mxu0
        %v1144 = vadd.f32 0.0, %v1143
        %v1145 = vpop.f32.mrf.mxu0
        %1146 = vdwg.mxu0
        %v1147 = vadd.f32 %v1025, %v1098
        %v1148 = vadd.f32 %v1026, %v1100
        %v1149 = vadd.f32 %v1027, %v1141
        %v1150 = vadd.f32 %v1028, %v1102
        %v1151 = vadd.f32 %v1029, %v1104
        %v1152 = vadd.f32 %v1030, %v1144
        %s1153 = scalar_lea.vmem %s2, 56
        %v1154 = vld [vmem:[%s1153] sm:$0xf]
        %v1155 = vld [vmem:[%s1153 + $0x4] sm:$0xf]
        %v1158 = vunpack.c.l.b16 %v1154
        %v1159 = vunpack.c.l.b16 %v1155
        %v1160 = vpack.c.b16 %v1159, %v1158
        %1161 = vrot.lane.b32.xlu0 %v320, 91
        %v1162 = vpop.permute.xlu0 %1161
        %1163 = vrot.lane.b32.xlu0 %v321, 91
        %v1164 = vpop.permute.xlu0 %1163
        %1165 = vrot.lane.b32.xlu0 %v322, 91
        %v1166 = vpop.permute.xlu0 %1165
        %1167 = vrot.lane.b32.xlu0 %v323, 91
        %v1168 = vpop.permute.xlu0 %1167
        %vm1169 = vcmask 744448
        %v1170 = vsel %vm1169, %v1162, %v1164
        %v1171 = vsel %vm1169, %v1164, %v1166
        %v1172 = vsel %vm1169, %v1166, %v1168
        %v1174 = vsel %vm336, %v1160, 0
        %v1177 = vsel %vm340, %v1170, 0
        %v1180 = vsel %vm340, %v1171, 0
        %v1183 = vsel %vm340, %v1172, 0
        %1185 = vmatprep.subr.bf16.mxu0 0
        %1186 = vmatpush1.bf16.msra.mxu0 0
        %1187 = vmatprep.subr.bf16.mxu0 0
        %1188 = vmatpush1.bf16.msra.mxu0 0
        %1189 = vmatprep.subr.bf16.mxu0 0
        %1190 = vmatpush1.bf16.msra.mxu0 0
        %1191 = vmatprep.subr.bf16.mxu0 0
        %1192 = vmatpush1.bf16.msra.mxu0 0
        %1193 = vmatprep.subr.bf16.mxu0 0
        %1194 = vmatpush1.bf16.msra.mxu0 0
        %1195 = vmatprep.subr.bf16.mxu0 0
        %1196 = vmatpush1.bf16.msra.mxu0 0
        %1197 = vmatprep.subr.bf16.mxu0 0
        %1198 = vmatpush1.bf16.msra.mxu0 0
        %1199 = vmatprep.subr.bf16.mxu0 %v1180
        %1200 = vmatpush1.bf16.msra.mxu0 %v1177
        %1201 = vmatprep.subr.bf16.mxu0 0
        %1202 = vmatpush2.bf16.msra.mxu0 0
        %1203 = vmatprep.subr.bf16.mxu0 0
        %1204 = vmatpush2.bf16.msra.mxu0 0
        %1205 = vmatprep.subr.bf16.mxu0 0
        %1206 = vmatpush2.bf16.msra.mxu0 0
        %1207 = vmatprep.subr.bf16.mxu0 0
        %1208 = vmatpush2.bf16.msra.mxu0 0
        %1209 = vmatprep.subr.bf16.mxu0 0
        %1210 = vmatpush2.bf16.msra.mxu0 0
        %1211 = vmatprep.subr.bf16.mxu0 0
        %1212 = vmatpush2.bf16.msra.mxu0 0
        %1213 = vmatprep.subr.bf16.mxu0 0
        %1214 = vmatpush2.bf16.msra.mxu0 0
        %1215 = vmatprep.subr.bf16.mxu0 0
        %1216 = vmatpush2.bf16.msra.mxu0 0
        %1217 = vmatprep.mubr.bf16.mxu0 0
        %1218 = vmatmul.mubr.bf16.gmra.mxu0 %v1174
        %v1219 = vpop.f32.mrf.mxu0
        %v1220 = vadd.f32 0.0, %v1219
        %v1221 = vpop.f32.mrf.mxu0
        %v1222 = vadd.f32 0.0, %v1221
        %v1223 = vpop.f32.mrf.mxu0
        %v1224 = vadd.f32 0.0, %v1223
        %v1225 = vpop.f32.mrf.mxu0
        %v1226 = vadd.f32 0.0, %v1225
        %1227 = vdwg.mxu0
        %1228 = vmatprep.subr.bf16.mxu0 0
        %1229 = vmatpush1.bf16.msra.mxu0 0
        %1230 = vmatprep.subr.bf16.mxu0 0
        %1231 = vmatpush1.bf16.msra.mxu0 0
        %1232 = vmatprep.subr.bf16.mxu0 0
        %1233 = vmatpush1.bf16.msra.mxu0 0
        %1234 = vmatprep.subr.bf16.mxu0 0
        %1235 = vmatpush1.bf16.msra.mxu0 0
        %1236 = vmatprep.subr.bf16.mxu0 0
        %1237 = vmatpush1.bf16.msra.mxu0 0
        %1238 = vmatprep.subr.bf16.mxu0 0
        %1239 = vmatpush1.bf16.msra.mxu0 0
        %1240 = vmatprep.subr.bf16.mxu0 0
        %1241 = vmatpush1.bf16.msra.mxu0 0
        %1242 = vmatprep.subr.bf16.mxu0 0
        %1243 = vmatpush1.bf16.msra.mxu0 %v1183
        %1244 = vmatprep.subr.bf16.mxu0 0
        %1245 = vmatpush2.bf16.msra.mxu0 0
        %1246 = vmatprep.subr.bf16.mxu0 0
        %1247 = vmatpush2.bf16.msra.mxu0 0
        %1248 = vmatprep.subr.bf16.mxu0 0
        %1249 = vmatpush2.bf16.msra.mxu0 0
        %1250 = vmatprep.subr.bf16.mxu0 0
        %1251 = vmatpush2.bf16.msra.mxu0 0
        %1252 = vmatprep.subr.bf16.mxu0 0
        %1253 = vmatpush2.bf16.msra.mxu0 0
        %1254 = vmatprep.subr.bf16.mxu0 0
        %1255 = vmatpush2.bf16.msra.mxu0 0
        %1256 = vmatprep.subr.bf16.mxu0 0
        %1257 = vmatpush2.bf16.msra.mxu0 0
        %1258 = vmatprep.subr.bf16.mxu0 0
        %1259 = vmatpush2.bf16.msra.mxu0 0
        %1260 = vmatprep.mubr.bf16.mxu0 0
        %1261 = vmatmul.mubr.bf16.gmra.mxu0 %v1174
        %v1262 = vpop.f32.mrf.mxu0
        %v1263 = vadd.f32 0.0, %v1262
        %v1264 = vpop.f32.mrf.mxu0
        %v1265 = vpop.f32.mrf.mxu0
        %v1266 = vadd.f32 0.0, %v1265
        %v1267 = vpop.f32.mrf.mxu0
        %1268 = vdwg.mxu0
        %v1269 = vadd.f32 %v1147, %v1220
        %v1270 = vadd.f32 %v1148, %v1222
        %v1271 = vadd.f32 %v1149, %v1263
        %v1272 = vadd.f32 %v1150, %v1224
        %v1273 = vadd.f32 %v1151, %v1226
        %v1274 = vadd.f32 %v1152, %v1266
        %s1275 = scalar_lea.vmem %s2, 64
        %v1276 = vld [vmem:[%s1275] sm:$0xf]
        %v1277 = vld [vmem:[%s1275 + $0x4] sm:$0xf]
        %v1280 = vunpack.c.l.b16 %v1276
        %v1281 = vunpack.c.l.b16 %v1277
        %v1282 = vpack.c.b16 %v1281, %v1280
        %1283 = vrot.lane.b32.xlu0 %v320, 90
        %v1284 = vpop.permute.xlu0 %1283
        %1285 = vrot.lane.b32.xlu0 %v321, 90
        %v1286 = vpop.permute.xlu0 %1285
        %1287 = vrot.lane.b32.xlu0 %v322, 90
        %v1288 = vpop.permute.xlu0 %1287
        %1289 = vrot.lane.b32.xlu0 %v323, 90
        %v1290 = vpop.permute.xlu0 %1289
        %vm1291 = vcmask 736256
        %v1292 = vsel %vm1291, %v1284, %v1286
        %v1293 = vsel %vm1291, %v1286, %v1288
        %v1294 = vsel %vm1291, %v1288, %v1290
        %v1296 = vsel %vm336, %v1282, 0
        %v1299 = vsel %vm340, %v1292, 0
        %v1302 = vsel %vm340, %v1293, 0
        %v1305 = vsel %vm340, %v1294, 0
        %1307 = vmatprep.subr.bf16.mxu0 0
        %1308 = vmatpush1.bf16.msra.mxu0 0
        %1309 = vmatprep.subr.bf16.mxu0 0
        %1310 = vmatpush1.bf16.msra.mxu0 0
        %1311 = vmatprep.subr.bf16.mxu0 0
        %1312 = vmatpush1.bf16.msra.mxu0 0
        %1313 = vmatprep.subr.bf16.mxu0 0
        %1314 = vmatpush1.bf16.msra.mxu0 0
        %1315 = vmatprep.subr.bf16.mxu0 0
        %1316 = vmatpush1.bf16.msra.mxu0 0
        %1317 = vmatprep.subr.bf16.mxu0 0
        %1318 = vmatpush1.bf16.msra.mxu0 0
        %1319 = vmatprep.subr.bf16.mxu0 0
        %1320 = vmatpush1.bf16.msra.mxu0 0
        %1321 = vmatprep.subr.bf16.mxu0 %v1302
        %1322 = vmatpush1.bf16.msra.mxu0 %v1299
        %1323 = vmatprep.subr.bf16.mxu0 0
        %1324 = vmatpush2.bf16.msra.mxu0 0
        %1325 = vmatprep.subr.bf16.mxu0 0
        %1326 = vmatpush2.bf16.msra.mxu0 0
        %1327 = vmatprep.subr.bf16.mxu0 0
        %1328 = vmatpush2.bf16.msra.mxu0 0
        %1329 = vmatprep.subr.bf16.mxu0 0
        %1330 = vmatpush2.bf16.msra.mxu0 0
        %1331 = vmatprep.subr.bf16.mxu0 0
        %1332 = vmatpush2.bf16.msra.mxu0 0
        %1333 = vmatprep.subr.bf16.mxu0 0
        %1334 = vmatpush2.bf16.msra.mxu0 0
        %1335 = vmatprep.subr.bf16.mxu0 0
        %1336 = vmatpush2.bf16.msra.mxu0 0
        %1337 = vmatprep.subr.bf16.mxu0 0
        %1338 = vmatpush2.bf16.msra.mxu0 0
        %1339 = vmatprep.mubr.bf16.mxu0 0
        %1340 = vmatmul.mubr.bf16.gmra.mxu0 %v1296
        %v1341 = vpop.f32.mrf.mxu0
        %v1342 = vadd.f32 0.0, %v1341
        %v1343 = vpop.f32.mrf.mxu0
        %v1344 = vadd.f32 0.0, %v1343
        %v1345 = vpop.f32.mrf.mxu0
        %v1346 = vadd.f32 0.0, %v1345
        %v1347 = vpop.f32.mrf.mxu0
        %v1348 = vadd.f32 0.0, %v1347
        %1349 = vdwg.mxu0
        %1350 = vmatprep.subr.bf16.mxu0 0
        %1351 = vmatpush1.bf16.msra.mxu0 0
        %1352 = vmatprep.subr.bf16.mxu0 0
        %1353 = vmatpush1.bf16.msra.mxu0 0
        %1354 = vmatprep.subr.bf16.mxu0 0
        %1355 = vmatpush1.bf16.msra.mxu0 0
        %1356 = vmatprep.subr.bf16.mxu0 0
        %1357 = vmatpush1.bf16.msra.mxu0 0
        %1358 = vmatprep.subr.bf16.mxu0 0
        %1359 = vmatpush1.bf16.msra.mxu0 0
        %1360 = vmatprep.subr.bf16.mxu0 0
        %1361 = vmatpush1.bf16.msra.mxu0 0
        %1362 = vmatprep.subr.bf16.mxu0 0
        %1363 = vmatpush1.bf16.msra.mxu0 0
        %1364 = vmatprep.subr.bf16.mxu0 0
        %1365 = vmatpush1.bf16.msra.mxu0 %v1305
        %1366 = vmatprep.subr.bf16.mxu0 0
        %1367 = vmatpush2.bf16.msra.mxu0 0
        %1368 = vmatprep.subr.bf16.mxu0 0
        %1369 = vmatpush2.bf16.msra.mxu0 0
        %1370 = vmatprep.subr.bf16.mxu0 0
        %1371 = vmatpush2.bf16.msra.mxu0 0
        %1372 = vmatprep.subr.bf16.mxu0 0
        %1373 = vmatpush2.bf16.msra.mxu0 0
        %1374 = vmatprep.subr.bf16.mxu0 0
        %1375 = vmatpush2.bf16.msra.mxu0 0
        %1376 = vmatprep.subr.bf16.mxu0 0
        %1377 = vmatpush2.bf16.msra.mxu0 0
        %1378 = vmatprep.subr.bf16.mxu0 0
        %1379 = vmatpush2.bf16.msra.mxu0 0
        %1380 = vmatprep.subr.bf16.mxu0 0
        %1381 = vmatpush2.bf16.msra.mxu0 0
        %1382 = vmatprep.mubr.bf16.mxu0 0
        %1383 = vmatmul.mubr.bf16.gmra.mxu0 %v1296
        %v1384 = vpop.f32.mrf.mxu0
        %v1385 = vadd.f32 0.0, %v1384
        %v1386 = vpop.f32.mrf.mxu0
        %v1387 = vpop.f32.mrf.mxu0
        %v1388 = vadd.f32 0.0, %v1387
        %v1389 = vpop.f32.mrf.mxu0
        %1390 = vdwg.mxu0
        %v1391 = vadd.f32 %v1269, %v1342
        %v1392 = vadd.f32 %v1270, %v1344
        %v1393 = vadd.f32 %v1271, %v1385
        %v1394 = vadd.f32 %v1272, %v1346
        %v1395 = vadd.f32 %v1273, %v1348
        %v1396 = vadd.f32 %v1274, %v1388
        %v1397 = vld [vmem:[%s3] sm:$0xff]
        %v1398 = vld [vmem:[%s3 + $0x8] sm:$0xff]
        %1400 = vset.pattern.permute.xlu0 0
        %1401 = vperm.xlu0 %1400, %v1397
        %v1402 = vpop.permute.xlu0 %1401
        %1405 = vset.pattern.permute.xlu0 0
        %1406 = vperm.xlu0 %1405, %v1398
        %v1407 = vpop.permute.xlu0 %1406
        %v1409 = vadd.f32 %v1391, %v1402
        %v1410 = vadd.f32 %v1392, %v1402
        %v1411 = vadd.f32 %v1393, %v1402
        %v1412 = vadd.f32 %v1394, %v1407
        %v1413 = vadd.f32 %v1395, %v1407
        %v1414 = vadd.f32 %v1396, %v1407
        %v1415 = vxor.u32 %v1409, 2147483648
        %v1416 = vxor.u32 %v1410, 2147483648
        %v1417 = vxor.u32 %v1411, 2147483648
        %v1418 = vxor.u32 %v1412, 2147483648
        %v1419 = vxor.u32 %v1413, 2147483648
        %v1420 = vxor.u32 %v1414, 2147483648
        %v1421 = vmul.f32 %v1415, 1.442695
        %v1422 = vpow.pop %v1421
        %v1423 = vmul.f32 %v1416, 1.442695
        %v1424 = vpow.pop %v1423
        %v1425 = vmul.f32 %v1417, 1.442695
        %v1426 = vpow.pop %v1425
        %v1427 = vmul.f32 %v1418, 1.442695
        %v1428 = vpow.pop %v1427
        %v1429 = vmul.f32 %v1419, 1.442695
        %v1430 = vpow.pop %v1429
        %v1431 = vmul.f32 %v1420, 1.442695
        %v1432 = vpow.pop %v1431
        %v1433 = vadd.f32 %v1422, 1.0
        %v1434 = vadd.f32 %v1424, 1.0
        %v1435 = vadd.f32 %v1426, 1.0
        %v1436 = vadd.f32 %v1428, 1.0
        %v1437 = vadd.f32 %v1430, 1.0
        %v1438 = vadd.f32 %v1432, 1.0
        %v1439 = vrcp.pop %v1433
        %v1440 = vmul.f32 1.0, %v1439
        %v1441 = vrcp.pop %v1434
        %v1442 = vmul.f32 1.0, %v1441
        %v1443 = vrcp.pop %v1435
        %v1444 = vmul.f32 1.0, %v1443
        %v1445 = vrcp.pop %v1436
        %v1446 = vmul.f32 1.0, %v1445
        %v1447 = vrcp.pop %v1437
        %v1448 = vmul.f32 1.0, %v1447
        %v1449 = vrcp.pop %v1438
        %v1450 = vmul.f32 1.0, %v1449
        %v1451 = vmul.f32 %v1409, %v1440
        %v1452 = vmul.f32 %v1410, %v1442
        %v1453 = vmul.f32 %v1411, %v1444
        %v1454 = vmul.f32 %v1412, %v1446
        %v1455 = vmul.f32 %v1413, %v1448
        %v1456 = vmul.f32 %v1414, %v1450
        %v1457 = vld [vmem:[%s4] sm:$0xf]
        %v1458 = vld [vmem:[%s4 + $0x4] sm:$0xf]
        %v1459 = vpack.c.bf16 %v1454, %v1451
        %v1460 = vpack.c.bf16 %v1455, %v1452
        %v1461 = vpack.c.bf16 %v1456, %v1453
        %v1462 = vld [vmem:[%s5] sm:$0xff]
        %v1463 = vld [vmem:[%s5 + $0x8] sm:$0xff]
        %1465 = vset.pattern.permute.xlu0 0
        %1466 = vperm.xlu0 %1465, %v1462
        %v1467 = vpop.permute.xlu0 %1466
        %1470 = vset.pattern.permute.xlu0 0
        %1471 = vperm.xlu0 %1470, %v1463
        %v1472 = vpop.permute.xlu0 %1471
        %v1476 = vunpack.c.l.b16 %v1457
        %v1477 = vunpack.c.l.b16 %v1458
        %v1478 = vpack.c.b16 %v1477, %v1476
        %vm1479 = vcmask 130048
        %v1481 = vsel %vm1479, %v1478, 0
        %1483 = vmatprep.subr.bf16.mxu0 0
        %1484 = vmatpush1.bf16.msra.mxu0 0
        %1485 = vmatprep.subr.bf16.mxu0 0
        %1486 = vmatpush1.bf16.msra.mxu0 0
        %1487 = vmatprep.subr.bf16.mxu0 0
        %1488 = vmatpush1.bf16.msra.mxu0 0
        %1489 = vmatprep.subr.bf16.mxu0 0
        %1490 = vmatpush1.bf16.msra.mxu0 0
        %1491 = vmatprep.subr.bf16.mxu0 0
        %1492 = vmatpush1.bf16.msra.mxu0 0
        %1493 = vmatprep.subr.bf16.mxu0 0
        %1494 = vmatpush1.bf16.msra.mxu0 0
        %1495 = vmatprep.subr.bf16.mxu0 0
        %1496 = vmatpush1.bf16.msra.mxu0 0
        %1497 = vmatprep.subr.bf16.mxu0 %v1460
        %1498 = vmatpush1.bf16.msra.mxu0 %v1459
        %1499 = vmatprep.subr.bf16.mxu0 0
        %1500 = vmatpush2.bf16.msra.mxu0 0
        %1501 = vmatprep.subr.bf16.mxu0 0
        %1502 = vmatpush2.bf16.msra.mxu0 0
        %1503 = vmatprep.subr.bf16.mxu0 0
        %1504 = vmatpush2.bf16.msra.mxu0 0
        %1505 = vmatprep.subr.bf16.mxu0 0
        %1506 = vmatpush2.bf16.msra.mxu0 0
        %1507 = vmatprep.subr.bf16.mxu0 0
        %1508 = vmatpush2.bf16.msra.mxu0 0
        %1509 = vmatprep.subr.bf16.mxu0 0
        %1510 = vmatpush2.bf16.msra.mxu0 0
        %1511 = vmatprep.subr.bf16.mxu0 0
        %1512 = vmatpush2.bf16.msra.mxu0 0
        %1513 = vmatprep.subr.bf16.mxu0 0
        %1514 = vmatpush2.bf16.msra.mxu0 0
        %1515 = vmatprep.mubr.bf16.mxu0 0
        %1516 = vmatmul.mubr.bf16.gmra.mxu0 %v1481
        %v1517 = vpop.f32.mrf.mxu0
        %v1518 = vadd.f32 %v1467, %v1517
        %v1519 = vpop.f32.mrf.mxu0
        %v1520 = vadd.f32 %v1467, %v1519
        %v1521 = vpop.f32.mrf.mxu0
        %v1522 = vadd.f32 %v1472, %v1521
        %v1523 = vpop.f32.mrf.mxu0
        %v1524 = vadd.f32 %v1472, %v1523
        %1525 = vdwg.mxu0
        %1526 = vmatprep.subr.bf16.mxu0 0
        %1527 = vmatpush1.bf16.msra.mxu0 0
        %1528 = vmatprep.subr.bf16.mxu0 0
        %1529 = vmatpush1.bf16.msra.mxu0 0
        %1530 = vmatprep.subr.bf16.mxu0 0
        %1531 = vmatpush1.bf16.msra.mxu0 0
        %1532 = vmatprep.subr.bf16.mxu0 0
        %1533 = vmatpush1.bf16.msra.mxu0 0
        %1534 = vmatprep.subr.bf16.mxu0 0
        %1535 = vmatpush1.bf16.msra.mxu0 0
        %1536 = vmatprep.subr.bf16.mxu0 0
        %1537 = vmatpush1.bf16.msra.mxu0 0
        %1538 = vmatprep.subr.bf16.mxu0 0
        %1539 = vmatpush1.bf16.msra.mxu0 0
        %1540 = vmatprep.subr.bf16.mxu0 0
        %1541 = vmatpush1.bf16.msra.mxu0 %v1461
        %1542 = vmatprep.subr.bf16.mxu0 0
        %1543 = vmatpush2.bf16.msra.mxu0 0
        %1544 = vmatprep.subr.bf16.mxu0 0
        %1545 = vmatpush2.bf16.msra.mxu0 0
        %1546 = vmatprep.subr.bf16.mxu0 0
        %1547 = vmatpush2.bf16.msra.mxu0 0
        %1548 = vmatprep.subr.bf16.mxu0 0
        %1549 = vmatpush2.bf16.msra.mxu0 0
        %1550 = vmatprep.subr.bf16.mxu0 0
        %1551 = vmatpush2.bf16.msra.mxu0 0
        %1552 = vmatprep.subr.bf16.mxu0 0
        %1553 = vmatpush2.bf16.msra.mxu0 0
        %1554 = vmatprep.subr.bf16.mxu0 0
        %1555 = vmatpush2.bf16.msra.mxu0 0
        %1556 = vmatprep.subr.bf16.mxu0 0
        %1557 = vmatpush2.bf16.msra.mxu0 0
        %1558 = vmatprep.mubr.bf16.mxu0 0
        %1559 = vmatmul.mubr.bf16.gmra.mxu0 %v1481
        %v1560 = vpop.f32.mrf.mxu0
        %v1561 = vadd.f32 %v1467, %v1560
        %v1562 = vpop.f32.mrf.mxu0
        %v1563 = vpop.f32.mrf.mxu0
        %v1564 = vadd.f32 %v1472, %v1563
        %v1565 = vpop.f32.mrf.mxu0
        %1566 = vdwg.mxu0
        %v1567 = vxor.u32 %v1518, 2147483648
        %v1568 = vxor.u32 %v1520, 2147483648
        %v1569 = vxor.u32 %v1561, 2147483648
        %v1570 = vmul.f32 %v1567, 1.442695
        %v1571 = vpow.pop %v1570
        %v1572 = vmul.f32 %v1568, 1.442695
        %v1573 = vpow.pop %v1572
        %v1574 = vmul.f32 %v1569, 1.442695
        %v1575 = vpow.pop %v1574
        %v1576 = vadd.f32 %v1571, 1.0
        %v1577 = vadd.f32 %v1573, 1.0
        %v1578 = vadd.f32 %v1575, 1.0
        %v1579 = vrcp.pop %v1576
        %v1580 = vmul.f32 1.0, %v1579
        %v1581 = vrcp.pop %v1577
        %v1582 = vmul.f32 1.0, %v1581
        %v1583 = vrcp.pop %v1578
        %v1584 = vmul.f32 1.0, %v1583
        %v1585 = vld [vmem:[%s292] sm:$0x7]
        %v1587 = vlaneseq
        %v1588 = vshrl.u32 %v1587, 7
        %v1589 = vsub.s32 0, %v1588
        %v1590 = vrot.slane %v1585, %v1589
        %v1591 = vlaneseq
        %v1592 = vshrl.u32 %v1591, 7
        %v1593 = vsub.s32 1, %v1592
        %v1594 = vrot.slane %v1585, %v1593
        %v1595 = vlaneseq
        %v1596 = vshrl.u32 %v1595, 7
        %v1597 = vsub.s32 2, %v1596
        %v1598 = vrot.slane %v1585, %v1597
        %v1602 = vmul.f32 %v1580, %v1590
        %v1603 = vmul.f32 %v1582, %v1594
        %v1604 = vmul.f32 %v1584, %v1598
        %v1605 = vld [vmem:[%s279] sm:$0xff]
        %v1606 = vpack.c.bf16 %v1602, %v1602
        %v1607 = vpack.c.bf16 %v1603, %v1603
        %v1608 = vpack.c.bf16 %v1604, %v1604
        %v1609 = vpack.c.bf16 %v1522, %v1522
        %v1610 = vpack.c.bf16 %v1524, %v1524
        %v1611 = vpack.c.bf16 %v1564, %v1564
        %1612 = vmatprep.subr.bf16.mxu0 0
        %1613 = vmatpush1.bf16.xpose.msra.mxu0 0
        %1614 = vmatprep.subr.bf16.mxu0 0
        %1615 = vmatpush1.bf16.xpose.msra.mxu0 0
        %1616 = vmatprep.subr.bf16.mxu0 0
        %1617 = vmatpush1.bf16.xpose.msra.mxu0 0
        %1618 = vmatprep.subr.bf16.mxu0 0
        %1619 = vmatpush1.bf16.xpose.msra.mxu0 0
        %1620 = vmatprep.subr.bf16.mxu0 0
        %1621 = vmatpush1.bf16.xpose.msra.mxu0 0
        %1622 = vmatprep.subr.bf16.mxu0 0
        %1623 = vmatpush1.bf16.xpose.msra.mxu0 0
        %1624 = vmatprep.subr.bf16.mxu0 0
        %1625 = vmatpush1.bf16.xpose.msra.mxu0 0
        %1626 = vmatprep.subr.bf16.mxu0 %v1610
        %1627 = vmatpush1.bf16.xpose.msra.mxu0 %v1609
        %1628 = vmatprep.subr.bf16.mxu0 0
        %1629 = vmatpush2.bf16.xpose.msra.mxu0 0
        %1630 = vmatprep.subr.bf16.mxu0 0
        %1631 = vmatpush2.bf16.xpose.msra.mxu0 0
        %1632 = vmatprep.subr.bf16.mxu0 0
        %1633 = vmatpush2.bf16.xpose.msra.mxu0 0
        %1634 = vmatprep.subr.bf16.mxu0 0
        %1635 = vmatpush2.bf16.xpose.msra.mxu0 0
        %1636 = vmatprep.subr.bf16.mxu0 0
        %1637 = vmatpush2.bf16.xpose.msra.mxu0 0
        %1638 = vmatprep.subr.bf16.mxu0 0
        %1639 = vmatpush2.bf16.xpose.msra.mxu0 0
        %1640 = vmatprep.subr.bf16.mxu0 0
        %1641 = vmatpush2.bf16.xpose.msra.mxu0 0
        %1642 = vmatprep.subr.bf16.mxu0 0
        %1643 = vmatpush2.bf16.xpose.msra.mxu0 0
        %1644 = vmatprep.mubr.bf16.mxu0 %v1607
        %1645 = vmatmul.mubr.bf16.gmra.mxu0 %v1606
        %v1646 = vpop.f32.mrf.mxu0
        %v1647 = vadd.f32 0.0, %v1646
        %v1648 = vpop.f32.mrf.mxu0
        %v1649 = vpop.f32.mrf.mxu0
        %v1650 = vpop.f32.mrf.mxu0
        %1651 = vdwg.mxu0
        %1652 = vmatprep.subr.bf16.mxu0 0
        %1653 = vmatpush1.bf16.xpose.msra.mxu0 0
        %1654 = vmatprep.subr.bf16.mxu0 0
        %1655 = vmatpush1.bf16.xpose.msra.mxu0 0
        %1656 = vmatprep.subr.bf16.mxu0 0
        %1657 = vmatpush1.bf16.xpose.msra.mxu0 0
        %1658 = vmatprep.subr.bf16.mxu0 0
        %1659 = vmatpush1.bf16.xpose.msra.mxu0 0
        %1660 = vmatprep.subr.bf16.mxu0 0
        %1661 = vmatpush1.bf16.xpose.msra.mxu0 0
        %1662 = vmatprep.subr.bf16.mxu0 0
        %1663 = vmatpush1.bf16.xpose.msra.mxu0 0
        %1664 = vmatprep.subr.bf16.mxu0 0
        %1665 = vmatpush1.bf16.xpose.msra.mxu0 0
        %1666 = vmatprep.subr.bf16.mxu0 0
        %1667 = vmatpush1.bf16.xpose.msra.mxu0 %v1611
        %1668 = vmatprep.subr.bf16.mxu0 0
        %1669 = vmatpush2.bf16.xpose.msra.mxu0 0
        %1670 = vmatprep.subr.bf16.mxu0 0
        %1671 = vmatpush2.bf16.xpose.msra.mxu0 0
        %1672 = vmatprep.subr.bf16.mxu0 0
        %1673 = vmatpush2.bf16.xpose.msra.mxu0 0
        %1674 = vmatprep.subr.bf16.mxu0 0
        %1675 = vmatpush2.bf16.xpose.msra.mxu0 0
        %1676 = vmatprep.subr.bf16.mxu0 0
        %1677 = vmatpush2.bf16.xpose.msra.mxu0 0
        %1678 = vmatprep.subr.bf16.mxu0 0
        %1679 = vmatpush2.bf16.xpose.msra.mxu0 0
        %1680 = vmatprep.subr.bf16.mxu0 0
        %1681 = vmatpush2.bf16.xpose.msra.mxu0 0
        %1682 = vmatprep.subr.bf16.mxu0 0
        %1683 = vmatpush2.bf16.xpose.msra.mxu0 0
        %1684 = vmatprep.mubr.bf16.mxu0 0
        %1685 = vmatmul.mubr.bf16.gmra.mxu0 %v1608
        %v1686 = vpop.f32.mrf.mxu0
        %v1687 = vadd.f32 %v1647, %v1686
        %v1688 = vpop.f32.mrf.mxu0
        %v1689 = vpop.f32.mrf.mxu0
        %v1690 = vpop.f32.mrf.mxu0
        %1691 = vdwg.mxu0
        %v1692 = vadd.f32 %v1605, %v1687
        %1693 = vst.msk [vmem:[%s279] sm:$0xff] %vm336, %v1692
        %s1694 = sand.u32 %s178, 1
        %s1695 = scalar_lea.sflag [#allocation3], %s1694
        %s1696 = sand.u32 %s178, 1
        %s1697 = smul.addr %s1696, 8
        %s1698 = scalar_lea.vmem [#allocation2], %s1697
        // Predicated region
        $region49: #{tpu_custom_call.1} parent=43 // pred_check
          %p1699 = pneg %p188
        $region50: #{tpu_custom_call.1} parent=43 // pred_check_branch
          %1701 = sbr.rel (%p1699) target = $region52
        $region51: #{tpu_custom_call.1} parent=43 // pred_region
          %s1703 = ssub.s32 128, 128
          %1704 = vsyncadd %s1695, %s1703
          %s1705 = smul.addr %s24, 128
          %s1706 = scalar_lea.hbm %s6, %s1705
          %s1708 = sshll.u32 %s1698, 4
          %s1709 = int_to_ptr.vmem [resolvable:$true] %s1708
          %1711 = dma.vmem_to_hbm [thread:$0]  %s1709, 128, %s1706, %s1695
        $region52: #{tpu_custom_call.1} parent=43 // pred_fallthru
          _
      $region44: #{tpu_custom_call.1} parent=5 // pred_fallthru
        _
      %p1712 = scmp.le.s32.totalorder 2, %s15
      // Predicated region
      $region53: #{tpu_custom_call.1} parent=5 // pred_check
        %p1713 = pneg %p1712
      $region54: #{tpu_custom_call.1} parent=5 // pred_check_branch
        %1715 = sbr.rel (%p1713) target = $region56
      $region55: #{tpu_custom_call.1} parent=5 // pred_region
        %s1716 = ssub.s32 %s15, 2
        // Predicated region
        $region57: #{tpu_custom_call.1} parent=55 // pred_check
          %p1717 = pneg %p194
        $region58: #{tpu_custom_call.1} parent=55 // pred_check_branch
          %1719 = sbr.rel (%p1717) target = $region60
        $region59: #{tpu_custom_call.1} parent=55 // pred_region
          %s1720 = sand.u32 %s179, 1
          %s1721 = scalar_lea.sflag [#allocation3], %s1720
          %s1722 = sand.u32 %s179, 1
          %s1723 = smul.addr %s1722, 8
          %s1724 = scalar_lea.vmem [#allocation2], %s1723
          %1725 = dma.done %s1721, 128
        $region60: #{tpu_custom_call.1} parent=55 // pred_fallthru
          _
      $region56: #{tpu_custom_call.1} parent=5 // pred_fallthru
        _
    $region6: #{tpu_custom_call.1} parent=1 // loop_footer
      %s19 = sadd.s32 1, %s15
    $region7: #{tpu_custom_call.1} parent=1 // loop_footer_branch
      %14 = sbr.rel target = $region3
    $region8: #{tpu_custom_call.1} parent=1 // loop_exit
      _
    %1726 = vsyncpa [#allocation3], 1
    %s1727 = scalar_lea.sflag [#allocation3], 1
    %1728 = vsyncpa %s1727, 1

</llo_original>
